<compile_context>
chip_gen: v7x
topology: tpu7x:2x2x1
jax: 0.10.0
libtpu: 0.0.40
codegen_flags: <defaults>
</compile_context>

<pallas_src>
import functools

import jax
import jax.numpy as jnp
from jax import lax
from jax.experimental import pallas as pl
from jax.experimental.pallas import tpu as pltpu

# Full-precision f32 matmuls everywhere (reference, wrapper, kernel trace) so
# the f32 path is numerically faithful.  bf16 operands are unaffected, so the
# fast bf16 MXU path (mxu_dtype=jnp.bfloat16 or bf16 inputs) keeps its speed.
jax.config.update("jax_default_matmul_precision", "highest")

_NEG_INF = -1e30  # finite "-inf": no inf-inf NaNs on padded rows/columns


def _round_up(x, m):
    return ((x + m - 1) // m) * m


# --------------------------------------------------------------------------
# Kernel 1: Q/K/V projection (runs ONCE over the sequence; 1/sqrt(d_kq) is
# folded into Q here so the flash kernel never rescales scores).
# --------------------------------------------------------------------------
def _qkv_projection_kernel(x_ref, wq_ref, wk_ref, wv_ref,
                           q_ref, k_ref, v_ref, *, scale):
    x = x_ref[...]
    q = jnp.dot(x, wq_ref[...], preferred_element_type=jnp.float32)
    q_ref[...] = (q * scale).astype(q_ref.dtype)
    k_ref[...] = jnp.dot(x, wk_ref[...],
                         preferred_element_type=jnp.float32).astype(k_ref.dtype)
    v_ref[...] = jnp.dot(x, wv_ref[...],
                         preferred_element_type=jnp.float32).astype(v_ref.dtype)


# --------------------------------------------------------------------------
# Kernel 2: flash-attention style softmax(QK^T)V with online softmax.
# grid = (q_tiles, kv_tiles); kv axis is the reduction ("arbitrary"), the
# q axis is "parallel" (megacore sharding on v7x).
# --------------------------------------------------------------------------
def _flash_attention_kernel(q_ref, k_ref, v_ref, o_ref,
                            m_scr, l_scr, acc_scr,
                            *, kv_tile, seq_len, mask_kv):
    kv = pl.program_id(1)

    @pl.when(kv == 0)
    def _init():
        m_scr[...] = jnp.full_like(m_scr, _NEG_INF)
        l_scr[...] = jnp.zeros_like(l_scr)
        acc_scr[...] = jnp.zeros_like(acc_scr)

    # Scores: contract the last dims of Q and K directly (no keys.T, so no
    # XLU transpose).  Operands stay in the input dtype; accumulate in f32.
    s = lax.dot_general(
        q_ref[...], k_ref[...],
        dimension_numbers=(((1,), (1,)), ((), ())),
        preferred_element_type=jnp.float32,
    )  # (tq, tkv), f32 — scale was folded into Q at projection time.

    if mask_kv:
        # Additive (1, tkv) bias: 0 on valid keys, -1e30 on seq padding.
        # One broadcast add per score element instead of iota+cmp+select.
        col = lax.broadcasted_iota(jnp.int32, (1, s.shape[1]), 1) + kv * kv_tile
        s = s + jnp.where(col < seq_len, 0.0, _NEG_INF).astype(jnp.float32)

    # Online softmax update (all state in f32).
    m_prev = m_scr[...]
    m_new = jnp.maximum(m_prev, jnp.max(s, axis=-1, keepdims=True))
    alpha = jnp.exp(m_prev - m_new)
    p = jnp.exp(s - m_new)
    l_scr[...] = alpha * l_scr[...] + jnp.sum(p, axis=-1, keepdims=True)
    acc_scr[...] = alpha * acc_scr[...] + jnp.dot(
        p.astype(v_ref.dtype), v_ref[...], preferred_element_type=jnp.float32)
    m_scr[...] = m_new

    @pl.when(kv == pl.num_programs(1) - 1)
    def _finalize():
        inv_l = pl.reciprocal(l_scr[...], approx=False)   # exact normalization
        o_ref[...] = (acc_scr[...] * inv_l).astype(o_ref.dtype)


# --------------------------------------------------------------------------
# Wrapper
# --------------------------------------------------------------------------
def self_attention(x, w_query, w_key, w_value, *, mxu_dtype=None,
                   q_tile_max=256, kv_tile_max=512):
    """Pallas forward pass equivalent to SelfAttention.forward (2-D x).

    mxu_dtype: optionally cast inputs (e.g. jnp.bfloat16) so all matmuls run
    on the bf16-native MXU.  Default None keeps the caller's dtype/accuracy.
    """
    assert kv_tile_max % q_tile_max == 0
    if mxu_dtype is not None:
        x = x.astype(mxu_dtype)
        w_query = w_query.astype(mxu_dtype)
        w_key = w_key.astype(mxu_dtype)
        w_value = w_value.astype(mxu_dtype)

    seq, d_in = x.shape
    d_in_q, d_out_kq = w_query.shape
    d_in_k, d_out_kq2 = w_key.shape
    d_in_v, d_out_v = w_value.shape
    assert d_in == d_in_q == d_in_k == d_in_v
    assert d_out_kq == d_out_kq2

    bpe = x.dtype.itemsize
    sub = max(8, 32 // bpe)              # sublane packing: 8 f32 / 16 bf16 / 32 i8
    s_base = _round_up(seq, sub)

    # Decoupled q / kv tiles (review): tq<=256, tkv<=512; for seq>256 this
    # guarantees >=2 q tiles so both v7x TensorCores get work, and kv tiles of
    # 512 cut grid-step overhead and online-softmax rescale passes.
    if s_base <= q_tile_max:             # tiny: single tile on both axes
        tq = tkv = s_pad = s_base
    elif s_base <= kv_tile_max:          # 2+ q tiles, single kv tile
        tq = q_tile_max
        s_pad = _round_up(s_base, tq)
        tkv = s_pad
    else:                                # large: 256 x 512 tiles
        tq, tkv = q_tile_max, kv_tile_max
        s_pad = _round_up(s_base, tkv)

    # Lane-dense padding of every feature dim; zero padding keeps the math
    # exact (padded features contribute 0, padded kv rows are masked, padded
    # q rows are sliced off).
    d_in_p = _round_up(d_in, 128)
    d_kq_p = _round_up(d_out_kq, 128)
    d_v_p = _round_up(d_out_v, 128)
    x_p = jnp.pad(x, ((0, s_pad - seq), (0, d_in_p - d_in)))
    wq_p = jnp.pad(w_query, ((0, d_in_p - d_in), (0, d_kq_p - d_out_kq)))
    wk_p = jnp.pad(w_key, ((0, d_in_p - d_in), (0, d_kq_p - d_out_kq)))
    wv_p = jnp.pad(w_value, ((0, d_in_p - d_in), (0, d_v_p - d_out_v)))

    scale = 1.0 / (float(d_out_kq) ** 0.5)

    # ---- Pass 1: project Q (pre-scaled), K, V once over the sequence. ----
    proj_tile = tq                        # divides s_pad in every case above
    n_proj = s_pad // proj_tile
    q_p, k_p, v_p = pl.pallas_call(
        functools.partial(_qkv_projection_kernel, scale=scale),
        out_shape=(jax.ShapeDtypeStruct((s_pad, d_kq_p), x_p.dtype),
                   jax.ShapeDtypeStruct((s_pad, d_kq_p), x_p.dtype),
                   jax.ShapeDtypeStruct((s_pad, d_v_p), x_p.dtype)),
        grid_spec=pltpu.PrefetchScalarGridSpec(
            num_scalar_prefetch=0,
            grid=(n_proj,),
            in_specs=[
                pl.BlockSpec((proj_tile, d_in_p), lambda i: (i, 0)),
                pl.BlockSpec((d_in_p, d_kq_p), lambda i: (0, 0)),
                pl.BlockSpec((d_in_p, d_kq_p), lambda i: (0, 0)),
                pl.BlockSpec((d_in_p, d_v_p), lambda i: (0, 0)),
            ],
            out_specs=[
                pl.BlockSpec((proj_tile, d_kq_p), lambda i: (i, 0)),
                pl.BlockSpec((proj_tile, d_kq_p), lambda i: (i, 0)),
                pl.BlockSpec((proj_tile, d_v_p), lambda i: (i, 0)),
            ],
        ),
        compiler_params=pltpu.CompilerParams(
            dimension_semantics=("parallel",)),
    )(x_p, wq_p, wk_p, wv_p)

    # ---- Pass 2: flash attention over pre-projected Q, K, V. ----
    n_q = s_pad // tq
    n_kv = s_pad // tkv
    mask_kv = s_pad != seq

    kernel = functools.partial(
        _flash_attention_kernel, kv_tile=tkv, seq_len=seq, mask_kv=mask_kv)

    # Scoped-VMEM budget from the chosen tiles (double-buffered blocks +
    # persistent scratch + f32 score-tile headroom); real footprint is a few
    # MiB, well inside v7x's 64 MiB physical VMEM.
    block_bytes = 2 * bpe * (tq * d_kq_p + tkv * (d_kq_p + d_v_p) + tq * d_v_p)
    scratch_bytes = 4 * (tq * d_v_p + 2 * tq)
    interm_bytes = 4 * tq * tkv * 2
    vmem_limit = int(min(max(2 * (block_bytes + scratch_bytes + interm_bytes),
                             16 * 1024 * 1024),
                         40 * 1024 * 1024))

    flops = 2 * s_pad * s_pad * (d_kq_p + d_v_p)
    bytes_accessed = bpe * (n_q * s_pad * (d_kq_p + d_v_p)   # K/V re-read per q tile
                            + s_pad * d_kq_p + s_pad * d_v_p)  # Q in + O out
    cost = pl.CostEstimate(flops=int(flops), transcendentals=int(s_pad * s_pad),
                           bytes_accessed=int(bytes_accessed))

    out_p = pl.pallas_call(
        kernel,
        out_shape=jax.ShapeDtypeStruct((s_pad, d_v_p), x_p.dtype),
        grid_spec=pltpu.PrefetchScalarGridSpec(
            num_scalar_prefetch=0,
            grid=(n_q, n_kv),                                   # kv (reduction) last
            in_specs=[
                pl.BlockSpec((tq, d_kq_p), lambda i, j: (i, 0)),   # Q tile
                pl.BlockSpec((tkv, d_kq_p), lambda i, j: (j, 0)),  # K tile
                pl.BlockSpec((tkv, d_v_p), lambda i, j: (j, 0)),   # V tile
            ],
            out_specs=pl.BlockSpec((tq, d_v_p), lambda i, j: (i, 0)),
            scratch_shapes=[
                pltpu.VMEM((tq, 1), jnp.float32),      # running max
                pltpu.VMEM((tq, 1), jnp.float32),      # running sum
                pltpu.VMEM((tq, d_v_p), jnp.float32),  # unnormalized accumulator
            ],
        ),
        compiler_params=pltpu.CompilerParams(
            dimension_semantics=("parallel", "arbitrary"),
            vmem_limit_bytes=vmem_limit,
        ),
        cost_estimate=cost,
    )(q_p, k_p, v_p)

    return out_p[:seq, :d_out_v]


def self_attention_ref(x, w_query, w_key, w_value, d_out_kq):
    """Pure-JAX reference mirroring the PyTorch module (full f32 precision)."""
    hp = jax.lax.Precision.HIGHEST
    keys = jnp.matmul(x, w_key, precision=hp)
    queries = jnp.matmul(x, w_query, precision=hp)
    values = jnp.matmul(x, w_value, precision=hp)
    attn_scores = jnp.matmul(queries, keys.T, precision=hp)
    attn_weights = jax.nn.softmax(attn_scores / (d_out_kq ** 0.5), axis=-1)
    return jnp.matmul(attn_weights, values, precision=hp)


def _make_inputs(seq, d_in, d_out_kq, d_out_v, seed):
    key = jax.random.PRNGKey(seed)
    kx, kq, kk, kv = jax.random.split(key, 4)
    # torch.rand -> uniform [0, 1); deterministic synthetic init.
    x = jax.random.uniform(kx, (seq, d_in), dtype=jnp.float32)
    w_query = jax.random.uniform(kq, (d_in, d_out_kq), dtype=jnp.float32)
    w_key = jax.random.uniform(kk, (d_in, d_out_kq), dtype=jnp.float32)
    w_value = jax.random.uniform(kv, (d_in, d_out_v), dtype=jnp.float32)
    return x, w_query, w_key, w_value


def _check(seq, d_in, d_out_kq, d_out_v, seed):
    x, w_query, w_key, w_value = _make_inputs(seq, d_in, d_out_kq, d_out_v, seed)
    out = jax.block_until_ready(self_attention(x, w_query, w_key, w_value))
    ref = self_attention_ref(x, w_query, w_key, w_value, d_out_kq)
    assert out.shape == (seq, d_out_v)
    max_err = float(jnp.max(jnp.abs(out - ref)))
    assert jnp.allclose(out, ref, atol=2e-2, rtol=2e-2), (
        f"mismatch vs reference at shape {(seq, d_in, d_out_kq, d_out_v)}: "
        f"max abs err {max_err}")


if __name__ == "__main__":
    # Small demo shape consistent with the module's forward: x is (seq, d_in).
    _check(seq=8, d_in=4, d_out_kq=32, d_out_v=32, seed=0)
    # Multi-q-tile case with kv masking (seq padded 300 -> 512, 2 q tiles).
    _check(seq=300, d_in=16, d_out_kq=48, d_out_v=40, seed=1)
    # Multi-kv-tile case exercising the online softmax across kv steps
    # (seq padded 640 -> 1024: 4 q tiles x 2 kv tiles).
    _check(seq=640, d_in=16, d_out_kq=48, d_out_v=40, seed=2)
    # bf16 fast-path smoke test (bf16 operands on the MXU); no tight tolerance.
    xb, wqb, wkb, wvb = _make_inputs(300, 16, 48, 40, 3)
    out_bf16 = jax.block_until_ready(
        self_attention(xb, wqb, wkb, wvb, mxu_dtype=jnp.bfloat16))
    assert out_bf16.shape == (300, 40)
    assert bool(jnp.all(jnp.isfinite(out_bf16.astype(jnp.float32))))
    print("KERNEL_OK")
</pallas_src>

<mosaic_0001>
module attributes {stable_mosaic.version = 11 : i64} {
  func.func @_qkv_projection_kernel(%arg0: i32, %arg1: memref<8x128xf32, #tpu.memory_space<vmem>>, %arg2: memref<128x128xf32, #tpu.memory_space<vmem>>, %arg3: memref<128x128xf32, #tpu.memory_space<vmem>>, %arg4: memref<128x128xf32, #tpu.memory_space<vmem>>, %arg5: memref<8x128xf32, #tpu.memory_space<vmem>>, %arg6: memref<8x128xf32, #tpu.memory_space<vmem>>, %arg7: memref<8x128xf32, #tpu.memory_space<vmem>>) attributes {dimension_semantics = [#tpu.dimension_semantics<parallel>], iteration_bounds = array<i64: 1>, scalar_prefetch = 0 : i64, scratch_operands = 0 : i64, tpu.core_type = #tpu.core_type<tc>, window_params = [{transform_indices = @transform_0, window_bounds = array<i64: 8, 128>}, {pipeline_mode = #tpu.pipeline_mode<synchronous>, transform_indices = @transform_1, window_bounds = array<i64: 128, 128>}, {pipeline_mode = #tpu.pipeline_mode<synchronous>, transform_indices = @transform_2, window_bounds = array<i64: 128, 128>}, {pipeline_mode = #tpu.pipeline_mode<synchronous>, transform_indices = @transform_3, window_bounds = array<i64: 128, 128>}, {transform_indices = @transform_4, window_bounds = array<i64: 8, 128>}, {transform_indices = @transform_5, window_bounds = array<i64: 8, 128>}, {transform_indices = @transform_6, window_bounds = array<i64: 8, 128>}]} {
    %c0 = arith.constant 0 : index
    %c0_0 = arith.constant 0 : index
    %0 = vector.load %arg1[%c0, %c0_0] : memref<8x128xf32, #tpu.memory_space<vmem>>, vector<8x128xf32>
    %c0_1 = arith.constant 0 : index
    %c0_2 = arith.constant 0 : index
    %1 = vector.load %arg2[%c0_1, %c0_2] : memref<128x128xf32, #tpu.memory_space<vmem>>, vector<128x128xf32>
    %cst = arith.constant dense<0.000000e+00> : vector<8x128xf32>
    %2 = tpu.matmul %0, %1, %cst {dimension_numbers = #tpu.dot_dimension_numbers<[1], [0], [0], [1], [0, 0, 1, 1], [], []>, precision = #tpu.contract_precision<fp32>} : vector<8x128xf32>, vector<128x128xf32>, vector<8x128xf32> -> vector<8x128xf32>
    %cst_3 = arith.constant 0.176776692 : f32
    %3 = vector.broadcast %cst_3 : f32 to vector<8x128xf32>
    %4 = arith.mulf %2, %3 : vector<8x128xf32>
    %c0_4 = arith.constant 0 : index
    %c0_5 = arith.constant 0 : index
    %5 = vector.load %arg5[%c0_4, %c0_5] : memref<8x128xf32, #tpu.memory_space<vmem>>, vector<8x128xf32>
    tpu.vector_store %arg5[%c0_4, %c0_5], %4 {strides = array<i32>} : memref<8x128xf32, #tpu.memory_space<vmem>>, vector<8x128xf32>,
    %c0_6 = arith.constant 0 : index
    %c0_7 = arith.constant 0 : index
    %6 = vector.load %arg3[%c0_6, %c0_7] : memref<128x128xf32, #tpu.memory_space<vmem>>, vector<128x128xf32>
    %cst_8 = arith.constant dense<0.000000e+00> : vector<8x128xf32>
    %7 = tpu.matmul %0, %6, %cst_8 {dimension_numbers = #tpu.dot_dimension_numbers<[1], [0], [0], [1], [0, 0, 1, 1], [], []>, precision = #tpu.contract_precision<fp32>} : vector<8x128xf32>, vector<128x128xf32>, vector<8x128xf32> -> vector<8x128xf32>
    %c0_9 = arith.constant 0 : index
    %c0_10 = arith.constant 0 : index
    %8 = vector.load %arg6[%c0_9, %c0_10] : memref<8x128xf32, #tpu.memory_space<vmem>>, vector<8x128xf32>
    tpu.vector_store %arg6[%c0_9, %c0_10], %7 {strides = array<i32>} : memref<8x128xf32, #tpu.memory_space<vmem>>, vector<8x128xf32>,
    %c0_11 = arith.constant 0 : index
    %c0_12 = arith.constant 0 : index
    %9 = vector.load %arg4[%c0_11, %c0_12] : memref<128x128xf32, #tpu.memory_space<vmem>>, vector<128x128xf32>
    %cst_13 = arith.constant dense<0.000000e+00> : vector<8x128xf32>
    %10 = tpu.matmul %0, %9, %cst_13 {dimension_numbers = #tpu.dot_dimension_numbers<[1], [0], [0], [1], [0, 0, 1, 1], [], []>, precision = #tpu.contract_precision<fp32>} : vector<8x128xf32>, vector<128x128xf32>, vector<8x128xf32> -> vector<8x128xf32>
    %c0_14 = arith.constant 0 : index
    %c0_15 = arith.constant 0 : index
    %11 = vector.load %arg7[%c0_14, %c0_15] : memref<8x128xf32, #tpu.memory_space<vmem>>, vector<8x128xf32>
    tpu.vector_store %arg7[%c0_14, %c0_15], %10 {strides = array<i32>} : memref<8x128xf32, #tpu.memory_space<vmem>>, vector<8x128xf32>,
    return
  }
  func.func @transform_0(%arg0: i32) -> (i32, i32) {
    %c0_i32 = arith.constant 0 : i32
    %c0_i32_0 = arith.constant 0 : i32
    return %arg0, %c0_i32 : i32, i32
  }
  func.func @transform_1(%arg0: i32) -> (i32, i32) {
    %c0_i32 = arith.constant 0 : i32
    %c0_i32_0 = arith.constant 0 : i32
    %c0_i32_1 = arith.constant 0 : i32
    return %c0_i32, %c0_i32_0 : i32, i32
  }
  func.func @transform_2(%arg0: i32) -> (i32, i32) {
    %c0_i32 = arith.constant 0 : i32
    %c0_i32_0 = arith.constant 0 : i32
    %c0_i32_1 = arith.constant 0 : i32
    return %c0_i32, %c0_i32_0 : i32, i32
  }
  func.func @transform_3(%arg0: i32) -> (i32, i32) {
    %c0_i32 = arith.constant 0 : i32
    %c0_i32_0 = arith.constant 0 : i32
    %c0_i32_1 = arith.constant 0 : i32
    return %c0_i32, %c0_i32_0 : i32, i32
  }
  func.func @transform_4(%arg0: i32) -> (i32, i32) {
    %c0_i32 = arith.constant 0 : i32
    %c0_i32_0 = arith.constant 0 : i32
    return %arg0, %c0_i32 : i32, i32
  }
  func.func @transform_5(%arg0: i32) -> (i32, i32) {
    %c0_i32 = arith.constant 0 : i32
    %c0_i32_0 = arith.constant 0 : i32
    return %arg0, %c0_i32 : i32, i32
  }
  func.func @transform_6(%arg0: i32) -> (i32, i32) {
    %c0_i32 = arith.constant 0 : i32
    %c0_i32_0 = arith.constant 0 : i32
    return %arg0, %c0_i32 : i32, i32
  }
}

</mosaic_0001>

<llo_original>
// kernel: tpu_custom_call.1
$region0: #{tpu_custom_call.1}
  #allocation0 [shape = 'u32[]', space=smem, size = 0x4, offset = 0x4, fixed_abs, tag = 'smem constant byte address 0x4 - core index']
  #allocation1 [shape = 'u32[144,128]{1,0:T(1,128)}', space=vmem, size = 0x12000, scoped, tag = 'internal scratch']
  %s0 = inlined_call_operand.hbm [shape: f32[8,128], index: 0, kind: input, shape index: {}]
  %s1 = inlined_call_operand.hbm [shape: f32[128,128], index: 1, kind: input, shape index: {}]
  %s2 = inlined_call_operand.hbm [shape: f32[128,128], index: 2, kind: input, shape index: {}]
  %s3 = inlined_call_operand.hbm [shape: f32[128,128], index: 3, kind: input, shape index: {}]
  %s4 = inlined_call_operand.hbm [shape: f32[8,128], index: 4, kind: output, shape index: {0}]
  %s5 = inlined_call_operand.hbm [shape: f32[8,128], index: 5, kind: output, shape index: {1}]
  %s6 = inlined_call_operand.hbm [shape: f32[8,128], index: 6, kind: output, shape index: {2}]
  %7 = xla_tuple %s4, %s5, %s6
  %s8 = sld [smem:[#allocation0]]
  $region58: #{tpu_custom_call.1} parent=0
    _
  %s10 = ssub.s32 1, %s8
  %s11 = scalar_select 0, %s10, %s8
  $region1: #{tpu_custom_call.1} parent=0
    #allocation2 [shape = 'u8[4096]{0}', space=vmem, size = 0x1000, scoped, tag = 'input window, operand 0, single buffered']
    #allocation3 [shape = 's32[1]{0}', space=sflag, size = 0x4, scoped, tag = 'scoped memory for tpu_custom_call.1']
    #allocation4 [shape = 's32[1]{0}', space=sflag, size = 0x4, scoped, tag = 'scoped memory for tpu_custom_call.1']
    #allocation5 [shape = 'u8[65536]{0}', space=vmem, size = 0x10000, scoped, tag = 'input window, operand 1, single buffered']
    #allocation6 [shape = 's32[1]{0}', space=sflag, size = 0x4, scoped, tag = 'scoped memory for tpu_custom_call.1']
    #allocation7 [shape = 'u8[65536]{0}', space=vmem, size = 0x10000, scoped, tag = 'input window, operand 2, single buffered']
    #allocation8 [shape = 'u8[65536]{0}', space=vmem, size = 0x10000, scoped, tag = 'input window, operand 3, single buffered']
    #allocation9 [shape = 's32[1]{0}', space=sflag, size = 0x4, scoped, tag = 'scoped memory for tpu_custom_call.1']
    #allocation10 [shape = 'u8[4096]{0}', space=vmem, size = 0x1000, scoped, tag = 'output window, operand 0, single buffered']
    #allocation11 [shape = 'u8[4096]{0}', space=vmem, size = 0x1000, scoped, tag = 'output window, operand 1, single buffered']
    #allocation12 [shape = 's32[1]{0}', space=sflag, size = 0x4, scoped, tag = 'scoped memory for tpu_custom_call.1']
    #allocation13 [shape = 'u8[4096]{0}', space=vmem, size = 0x1000, scoped, tag = 'output window, operand 2, single buffered']
    %12 = vsyncpa [#allocation3], 0
    %13 = vsyncpa [#allocation6], 0
    %14 = vsyncpa [#allocation9], 0
    %15 = vsyncpa [#allocation4], 0
    %16 = vsyncpa [#allocation12], 0
    // Predicated region
    $region2: #{tpu_custom_call.1} parent=1 // pred_check
      _
    $region3: #{tpu_custom_call.1} parent=1 // pred_check_branch
      %18 = sbr.rel (0) target = $region5
    $region4: #{tpu_custom_call.1} parent=1 // pred_region
      %s20 = ssub.s32 128, 128
      %21 = vsyncadd [#allocation3], %s20
      %s23 = sshll.u32 [#allocation2], 4
      %s24 = int_to_ptr.vmem [resolvable:$true] %s23
      %26 = dma.hbm_to_vmem [thread:$0]  %s0, 128, %s24, [#allocation3]
    $region5: #{tpu_custom_call.1} parent=1 // pred_fallthru
      _
    // Predicated region
    $region6: #{tpu_custom_call.1} parent=1 // pred_check
      _
    $region7: #{tpu_custom_call.1} parent=1 // pred_check_branch
      %28 = sbr.rel (0) target = $region9
    $region8: #{tpu_custom_call.1} parent=1 // pred_region
      %s30 = ssub.s32 2048, 2048
      %31 = vsyncadd [#allocation6], %s30
      %s32 = sshll.u32 [#allocation5], 4
      %s33 = int_to_ptr.vmem [resolvable:$true] %s32
      %38 = dma.hbm_to_vmem [thread:$0]  %s1, 2048, %s33, [#allocation6], 128, 128, 8
    $region9: #{tpu_custom_call.1} parent=1 // pred_fallthru
      _
    // Predicated region
    $region10: #{tpu_custom_call.1} parent=1 // pred_check
      _
    $region11: #{tpu_custom_call.1} parent=1 // pred_check_branch
      %40 = sbr.rel (0) target = $region13
    $region12: #{tpu_custom_call.1} parent=1 // pred_region
      %s42 = ssub.s32 2048, 2048
      %43 = vsyncadd [#allocation6], %s42
      %s44 = sshll.u32 [#allocation7], 4
      %s45 = int_to_ptr.vmem [resolvable:$true] %s44
      %50 = dma.hbm_to_vmem [thread:$0]  %s2, 2048, %s45, [#allocation6], 128, 128, 8
    $region13: #{tpu_custom_call.1} parent=1 // pred_fallthru
      _
    // Predicated region
    $region14: #{tpu_custom_call.1} parent=1 // pred_check
      _
    $region15: #{tpu_custom_call.1} parent=1 // pred_check_branch
      %52 = sbr.rel (0) target = $region17
    $region16: #{tpu_custom_call.1} parent=1 // pred_region
      %s54 = ssub.s32 2048, 2048
      %55 = vsyncadd [#allocation9], %s54
      %s56 = sshll.u32 [#allocation8], 4
      %s57 = int_to_ptr.vmem [resolvable:$true] %s56
      %62 = dma.hbm_to_vmem [thread:$0]  %s3, 2048, %s57, [#allocation9], 128, 128, 8
    $region17: #{tpu_custom_call.1} parent=1 // pred_fallthru
      _
    // Predicated region
    $region18: #{tpu_custom_call.1} parent=1 // pred_check
      _
    $region19: #{tpu_custom_call.1} parent=1 // pred_check_branch
      %64 = sbr.rel (0) target = $region21
    $region20: #{tpu_custom_call.1} parent=1 // pred_region
      %65 = dma.done [#allocation3], 128
    $region21: #{tpu_custom_call.1} parent=1 // pred_fallthru
      _
    // Predicated region
    $region22: #{tpu_custom_call.1} parent=1 // pred_check
      _
    $region23: #{tpu_custom_call.1} parent=1 // pred_check_branch
      %67 = sbr.rel (0) target = $region25
    $region24: #{tpu_custom_call.1} parent=1 // pred_region
      %68 = dma.done [#allocation6], 2048
    $region25: #{tpu_custom_call.1} parent=1 // pred_fallthru
      _
    // Predicated region
    $region26: #{tpu_custom_call.1} parent=1 // pred_check
      _
    $region27: #{tpu_custom_call.1} parent=1 // pred_check_branch
      %70 = sbr.rel (0) target = $region29
    $region28: #{tpu_custom_call.1} parent=1 // pred_region
      %71 = dma.done [#allocation6], 2048
    $region29: #{tpu_custom_call.1} parent=1 // pred_fallthru
      _
    // Predicated region
    $region30: #{tpu_custom_call.1} parent=1 // pred_check
      _
    $region31: #{tpu_custom_call.1} parent=1 // pred_check_branch
      %73 = sbr.rel (0) target = $region33
    $region32: #{tpu_custom_call.1} parent=1 // pred_region
      %74 = dma.done [#allocation9], 2048
    $region33: #{tpu_custom_call.1} parent=1 // pred_fallthru
      _
    %v75 = vld [vmem:[#allocation2] sm:$0xff]
    %v76 = vld [vmem:[#allocation5] sm:$0xff]
    %v77 = vld [vmem:[#allocation5 + $0x8] sm:$0xff]
    %v78 = vld [vmem:[#allocation5 + $0x10] sm:$0xff]
    %v79 = vld [vmem:[#allocation5 + $0x18] sm:$0xff]
    %v80 = vld [vmem:[#allocation5 + $0x20] sm:$0xff]
    %v81 = vld [vmem:[#allocation5 + $0x28] sm:$0xff]
    %v82 = vld [vmem:[#allocation5 + $0x30] sm:$0xff]
    %v83 = vld [vmem:[#allocation5 + $0x38] sm:$0xff]
    %v84 = vld [vmem:[#allocation5 + $0x40] sm:$0xff]
    %v85 = vld [vmem:[#allocation5 + $0x48] sm:$0xff]
    %v86 = vld [vmem:[#allocation5 + $0x50] sm:$0xff]
    %v87 = vld [vmem:[#allocation5 + $0x58] sm:$0xff]
    %v88 = vld [vmem:[#allocation5 + $0x60] sm:$0xff]
    %v89 = vld [vmem:[#allocation5 + $0x68] sm:$0xff]
    %v90 = vld [vmem:[#allocation5 + $0x70] sm:$0xff]
    %v91 = vld [vmem:[#allocation5 + $0x78] sm:$0xff]
    %92 = vmatprep.subr.mxu0 0.0
    %v93 = vand.u32 %v76, 4294901760
    %94 = vmatpush1.msra.mxu0 %v93
    %95 = vmatprep.subr.mxu0 0.0
    %v96 = vand.u32 %v77, 4294901760
    %97 = vmatpush1.msra.mxu0 %v96
    %98 = vmatprep.subr.mxu0 0.0
    %v99 = vand.u32 %v78, 4294901760
    %100 = vmatpush1.msra.mxu0 %v99
    %101 = vmatprep.subr.mxu0 0.0
    %v102 = vand.u32 %v79, 4294901760
    %103 = vmatpush1.msra.mxu0 %v102
    %104 = vmatprep.subr.mxu0 0.0
    %v105 = vand.u32 %v80, 4294901760
    %106 = vmatpush1.msra.mxu0 %v105
    %107 = vmatprep.subr.mxu0 0.0
    %v108 = vand.u32 %v81, 4294901760
    %109 = vmatpush1.msra.mxu0 %v108
    %110 = vmatprep.subr.mxu0 0.0
    %v111 = vand.u32 %v82, 4294901760
    %112 = vmatpush1.msra.mxu0 %v111
    %113 = vmatprep.subr.mxu0 0.0
    %v114 = vand.u32 %v83, 4294901760
    %115 = vmatpush1.msra.mxu0 %v114
    %116 = vmatprep.subr.mxu0 0.0
    %v117 = vand.u32 %v84, 4294901760
    %118 = vmatpush1.msra.mxu0 %v117
    %119 = vmatprep.subr.mxu0 0.0
    %v120 = vand.u32 %v85, 4294901760
    %121 = vmatpush1.msra.mxu0 %v120
    %122 = vmatprep.subr.mxu0 0.0
    %v123 = vand.u32 %v86, 4294901760
    %124 = vmatpush1.msra.mxu0 %v123
    %125 = vmatprep.subr.mxu0 0.0
    %v126 = vand.u32 %v87, 4294901760
    %127 = vmatpush1.msra.mxu0 %v126
    %128 = vmatprep.subr.mxu0 0.0
    %v129 = vand.u32 %v88, 4294901760
    %130 = vmatpush1.msra.mxu0 %v129
    %131 = vmatprep.subr.mxu0 0.0
    %v132 = vand.u32 %v89, 4294901760
    %133 = vmatpush1.msra.mxu0 %v132
    %134 = vmatprep.subr.mxu0 0.0
    %v135 = vand.u32 %v90, 4294901760
    %136 = vmatpush1.msra.mxu0 %v135
    %137 = vmatprep.subr.mxu0 0.0
    %v138 = vand.u32 %v91, 4294901760
    %139 = vmatpush1.msra.mxu0 %v138
    %140 = vmatprep.subr.mxu0 0.0
    %141 = vmatpush1.msra.mxu0 0.0
    %142 = vmatprep.subr.mxu0 0.0
    %143 = vmatpush1.msra.mxu0 0.0
    %144 = vmatprep.subr.mxu0 0.0
    %145 = vmatpush1.msra.mxu0 0.0
    %146 = vmatprep.subr.mxu0 0.0
    %147 = vmatpush1.msra.mxu0 0.0
    %148 = vmatprep.subr.mxu0 0.0
    %149 = vmatpush1.msra.mxu0 0.0
    %150 = vmatprep.subr.mxu0 0.0
    %151 = vmatpush1.msra.mxu0 0.0
    %152 = vmatprep.subr.mxu0 0.0
    %153 = vmatpush1.msra.mxu0 0.0
    %154 = vmatprep.subr.mxu0 0.0
    %155 = vmatpush1.msra.mxu0 0.0
    %156 = vmatprep.subr.mxu0 0.0
    %157 = vmatpush1.msra.mxu0 0.0
    %158 = vmatprep.subr.mxu0 0.0
    %159 = vmatpush1.msra.mxu0 0.0
    %160 = vmatprep.subr.mxu0 0.0
    %161 = vmatpush1.msra.mxu0 0.0
    %162 = vmatprep.subr.mxu0 0.0
    %163 = vmatpush1.msra.mxu0 0.0
    %164 = vmatprep.subr.mxu0 0.0
    %165 = vmatpush1.msra.mxu0 0.0
    %166 = vmatprep.subr.mxu0 0.0
    %167 = vmatpush1.msra.mxu0 0.0
    %168 = vmatprep.subr.mxu0 0.0
    %169 = vmatpush1.msra.mxu0 0.0
    %170 = vmatprep.subr.mxu0 0.0
    %171 = vmatpush1.msra.mxu0 0.0
    %172 = vmatprep.mubr.f32.mxu0 0.0
    %v173 = vand.u32 %v75, 4294901760
    %v174 = vsub.f32 %v75, %v173
    %v175 = vand.u32 %v174, 4294901760
    %v176 = vsub.f32 %v174, %v175
    %v177 = vand.u32 %v176, 4294901760
    %178 = vmatmul.mubr.f32.gmra.mrb[0].mxu0 %v177
    %v179 = vpop.f32.mrb[0].mxu0
    %v180 = vadd.f32 0.0, %v179
    %v181 = vpop.f32.mrb[0].mxu0
    %182 = vdwg.mxu0
    %183 = vmatprep.subr.mxu0 0.0
    %v184 = vand.u32 %v76, 4294901760
    %v185 = vsub.f32 %v76, %v184
    %v186 = vand.u32 %v185, 4294901760
    %v187 = vsub.f32 %v185, %v186
    %v188 = vand.u32 %v187, 4294901760
    %189 = vmatpush1.msra.mxu0 %v188
    %190 = vmatprep.subr.mxu0 0.0
    %v191 = vand.u32 %v77, 4294901760
    %v192 = vsub.f32 %v77, %v191
    %v193 = vand.u32 %v192, 4294901760
    %v194 = vsub.f32 %v192, %v193
    %v195 = vand.u32 %v194, 4294901760
    %196 = vmatpush1.msra.mxu0 %v195
    %197 = vmatprep.subr.mxu0 0.0
    %v198 = vand.u32 %v78, 4294901760
    %v199 = vsub.f32 %v78, %v198
    %v200 = vand.u32 %v199, 4294901760
    %v201 = vsub.f32 %v199, %v200
    %v202 = vand.u32 %v201, 4294901760
    %203 = vmatpush1.msra.mxu0 %v202
    %204 = vmatprep.subr.mxu0 0.0
    %v205 = vand.u32 %v79, 4294901760
    %v206 = vsub.f32 %v79, %v205
    %v207 = vand.u32 %v206, 4294901760
    %v208 = vsub.f32 %v206, %v207
    %v209 = vand.u32 %v208, 4294901760
    %210 = vmatpush1.msra.mxu0 %v209
    %211 = vmatprep.subr.mxu0 0.0
    %v212 = vand.u32 %v80, 4294901760
    %v213 = vsub.f32 %v80, %v212
    %v214 = vand.u32 %v213, 4294901760
    %v215 = vsub.f32 %v213, %v214
    %v216 = vand.u32 %v215, 4294901760
    %217 = vmatpush1.msra.mxu0 %v216
    %218 = vmatprep.subr.mxu0 0.0
    %v219 = vand.u32 %v81, 4294901760
    %v220 = vsub.f32 %v81, %v219
    %v221 = vand.u32 %v220, 4294901760
    %v222 = vsub.f32 %v220, %v221
    %v223 = vand.u32 %v222, 4294901760
    %224 = vmatpush1.msra.mxu0 %v223
    %225 = vmatprep.subr.mxu0 0.0
    %v226 = vand.u32 %v82, 4294901760
    %v227 = vsub.f32 %v82, %v226
    %v228 = vand.u32 %v227, 4294901760
    %v229 = vsub.f32 %v227, %v228
    %v230 = vand.u32 %v229, 4294901760
    %231 = vmatpush1.msra.mxu0 %v230
    %232 = vmatprep.subr.mxu0 0.0
    %v233 = vand.u32 %v83, 4294901760
    %v234 = vsub.f32 %v83, %v233
    %v235 = vand.u32 %v234, 4294901760
    %v236 = vsub.f32 %v234, %v235
    %v237 = vand.u32 %v236, 4294901760
    %238 = vmatpush1.msra.mxu0 %v237
    %239 = vmatprep.subr.mxu0 0.0
    %v240 = vand.u32 %v84, 4294901760
    %v241 = vsub.f32 %v84, %v240
    %v242 = vand.u32 %v241, 4294901760
    %v243 = vsub.f32 %v241, %v242
    %v244 = vand.u32 %v243, 4294901760
    %245 = vmatpush1.msra.mxu0 %v244
    %246 = vmatprep.subr.mxu0 0.0
    %v247 = vand.u32 %v85, 4294901760
    %v248 = vsub.f32 %v85, %v247
    %v249 = vand.u32 %v248, 4294901760
    %v250 = vsub.f32 %v248, %v249
    %v251 = vand.u32 %v250, 4294901760
    %252 = vmatpush1.msra.mxu0 %v251
    %253 = vmatprep.subr.mxu0 0.0
    %v254 = vand.u32 %v86, 4294901760
    %v255 = vsub.f32 %v86, %v254
    %v256 = vand.u32 %v255, 4294901760
    %v257 = vsub.f32 %v255, %v256
    %v258 = vand.u32 %v257, 4294901760
    %259 = vmatpush1.msra.mxu0 %v258
    %260 = vmatprep.subr.mxu0 0.0
    %v261 = vand.u32 %v87, 4294901760
    %v262 = vsub.f32 %v87, %v261
    %v263 = vand.u32 %v262, 4294901760
    %v264 = vsub.f32 %v262, %v263
    %v265 = vand.u32 %v264, 4294901760
    %266 = vmatpush1.msra.mxu0 %v265
    %267 = vmatprep.subr.mxu0 0.0
    %v268 = vand.u32 %v88, 4294901760
    %v269 = vsub.f32 %v88, %v268
    %v270 = vand.u32 %v269, 4294901760
    %v271 = vsub.f32 %v269, %v270
    %v272 = vand.u32 %v271, 4294901760
    %273 = vmatpush1.msra.mxu0 %v272
    %274 = vmatprep.subr.mxu0 0.0
    %v275 = vand.u32 %v89, 4294901760
    %v276 = vsub.f32 %v89, %v275
    %v277 = vand.u32 %v276, 4294901760
    %v278 = vsub.f32 %v276, %v277
    %v279 = vand.u32 %v278, 4294901760
    %280 = vmatpush1.msra.mxu0 %v279
    %281 = vmatprep.subr.mxu0 0.0
    %v282 = vand.u32 %v90, 4294901760
    %v283 = vsub.f32 %v90, %v282
    %v284 = vand.u32 %v283, 4294901760
    %v285 = vsub.f32 %v283, %v284
    %v286 = vand.u32 %v285, 4294901760
    %287 = vmatpush1.msra.mxu0 %v286
    %288 = vmatprep.subr.mxu0 0.0
    %v289 = vand.u32 %v91, 4294901760
    %v290 = vsub.f32 %v91, %v289
    %v291 = vand.u32 %v290, 4294901760
    %v292 = vsub.f32 %v290, %v291
    %v293 = vand.u32 %v292, 4294901760
    %294 = vmatpush1.msra.mxu0 %v293
    %295 = vmatprep.subr.mxu0 0.0
    %296 = vmatpush1.msra.mxu0 0.0
    %297 = vmatprep.subr.mxu0 0.0
    %298 = vmatpush1.msra.mxu0 0.0
    %299 = vmatprep.subr.mxu0 0.0
    %300 = vmatpush1.msra.mxu0 0.0
    %301 = vmatprep.subr.mxu0 0.0
    %302 = vmatpush1.msra.mxu0 0.0
    %303 = vmatprep.subr.mxu0 0.0
    %304 = vmatpush1.msra.mxu0 0.0
    %305 = vmatprep.subr.mxu0 0.0
    %306 = vmatpush1.msra.mxu0 0.0
    %307 = vmatprep.subr.mxu0 0.0
    %308 = vmatpush1.msra.mxu0 0.0
    %309 = vmatprep.subr.mxu0 0.0
    %310 = vmatpush1.msra.mxu0 0.0
    %311 = vmatprep.subr.mxu0 0.0
    %312 = vmatpush1.msra.mxu0 0.0
    %313 = vmatprep.subr.mxu0 0.0
    %314 = vmatpush1.msra.mxu0 0.0
    %315 = vmatprep.subr.mxu0 0.0
    %316 = vmatpush1.msra.mxu0 0.0
    %317 = vmatprep.subr.mxu0 0.0
    %318 = vmatpush1.msra.mxu0 0.0
    %319 = vmatprep.subr.mxu0 0.0
    %320 = vmatpush1.msra.mxu0 0.0
    %321 = vmatprep.subr.mxu0 0.0
    %322 = vmatpush1.msra.mxu0 0.0
    %323 = vmatprep.subr.mxu0 0.0
    %324 = vmatpush1.msra.mxu0 0.0
    %325 = vmatprep.subr.mxu0 0.0
    %326 = vmatpush1.msra.mxu0 0.0
    %327 = vmatprep.mubr.f32.mxu0 0.0
    %v328 = vand.u32 %v75, 4294901760
    %329 = vmatmul.mubr.f32.gmra.mrb[0].mxu0 %v328
    %v330 = vpop.f32.mrb[0].mxu0
    %v331 = vadd.f32 %v180, %v330
    %v332 = vpop.f32.mrb[0].mxu0
    %333 = vdwg.mxu0
    %334 = vmatprep.subr.mxu0 0.0
    %v335 = vand.u32 %v76, 4294901760
    %v336 = vsub.f32 %v76, %v335
    %337 = vmatpush1.msra.mxu0 %v336
    %338 = vmatprep.subr.mxu0 0.0
    %v339 = vand.u32 %v77, 4294901760
    %v340 = vsub.f32 %v77, %v339
    %341 = vmatpush1.msra.mxu0 %v340
    %342 = vmatprep.subr.mxu0 0.0
    %v343 = vand.u32 %v78, 4294901760
    %v344 = vsub.f32 %v78, %v343
    %345 = vmatpush1.msra.mxu0 %v344
    %346 = vmatprep.subr.mxu0 0.0
    %v347 = vand.u32 %v79, 4294901760
    %v348 = vsub.f32 %v79, %v347
    %349 = vmatpush1.msra.mxu0 %v348
    %350 = vmatprep.subr.mxu0 0.0
    %v351 = vand.u32 %v80, 4294901760
    %v352 = vsub.f32 %v80, %v351
    %353 = vmatpush1.msra.mxu0 %v352
    %354 = vmatprep.subr.mxu0 0.0
    %v355 = vand.u32 %v81, 4294901760
    %v356 = vsub.f32 %v81, %v355
    %357 = vmatpush1.msra.mxu0 %v356
    %358 = vmatprep.subr.mxu0 0.0
    %v359 = vand.u32 %v82, 4294901760
    %v360 = vsub.f32 %v82, %v359
    %361 = vmatpush1.msra.mxu0 %v360
    %362 = vmatprep.subr.mxu0 0.0
    %v363 = vand.u32 %v83, 4294901760
    %v364 = vsub.f32 %v83, %v363
    %365 = vmatpush1.msra.mxu0 %v364
    %366 = vmatprep.subr.mxu0 0.0
    %v367 = vand.u32 %v84, 4294901760
    %v368 = vsub.f32 %v84, %v367
    %369 = vmatpush1.msra.mxu0 %v368
    %370 = vmatprep.subr.mxu0 0.0
    %v371 = vand.u32 %v85, 4294901760
    %v372 = vsub.f32 %v85, %v371
    %373 = vmatpush1.msra.mxu0 %v372
    %374 = vmatprep.subr.mxu0 0.0
    %v375 = vand.u32 %v86, 4294901760
    %v376 = vsub.f32 %v86, %v375
    %377 = vmatpush1.msra.mxu0 %v376
    %378 = vmatprep.subr.mxu0 0.0
    %v379 = vand.u32 %v87, 4294901760
    %v380 = vsub.f32 %v87, %v379
    %381 = vmatpush1.msra.mxu0 %v380
    %382 = vmatprep.subr.mxu0 0.0
    %v383 = vand.u32 %v88, 4294901760
    %v384 = vsub.f32 %v88, %v383
    %385 = vmatpush1.msra.mxu0 %v384
    %386 = vmatprep.subr.mxu0 0.0
    %v387 = vand.u32 %v89, 4294901760
    %v388 = vsub.f32 %v89, %v387
    %389 = vmatpush1.msra.mxu0 %v388
    %390 = vmatprep.subr.mxu0 0.0
    %v391 = vand.u32 %v90, 4294901760
    %v392 = vsub.f32 %v90, %v391
    %393 = vmatpush1.msra.mxu0 %v392
    %394 = vmatprep.subr.mxu0 0.0
    %v395 = vand.u32 %v91, 4294901760
    %v396 = vsub.f32 %v91, %v395
    %397 = vmatpush1.msra.mxu0 %v396
    %398 = vmatprep.subr.mxu0 0.0
    %399 = vmatpush1.msra.mxu0 0.0
    %400 = vmatprep.subr.mxu0 0.0
    %401 = vmatpush1.msra.mxu0 0.0
    %402 = vmatprep.subr.mxu0 0.0
    %403 = vmatpush1.msra.mxu0 0.0
    %404 = vmatprep.subr.mxu0 0.0
    %405 = vmatpush1.msra.mxu0 0.0
    %406 = vmatprep.subr.mxu0 0.0
    %407 = vmatpush1.msra.mxu0 0.0
    %408 = vmatprep.subr.mxu0 0.0
    %409 = vmatpush1.msra.mxu0 0.0
    %410 = vmatprep.subr.mxu0 0.0
    %411 = vmatpush1.msra.mxu0 0.0
    %412 = vmatprep.subr.mxu0 0.0
    %413 = vmatpush1.msra.mxu0 0.0
    %414 = vmatprep.subr.mxu0 0.0
    %415 = vmatpush1.msra.mxu0 0.0
    %416 = vmatprep.subr.mxu0 0.0
    %417 = vmatpush1.msra.mxu0 0.0
    %418 = vmatprep.subr.mxu0 0.0
    %419 = vmatpush1.msra.mxu0 0.0
    %420 = vmatprep.subr.mxu0 0.0
    %421 = vmatpush1.msra.mxu0 0.0
    %422 = vmatprep.subr.mxu0 0.0
    %423 = vmatpush1.msra.mxu0 0.0
    %424 = vmatprep.subr.mxu0 0.0
    %425 = vmatpush1.msra.mxu0 0.0
    %426 = vmatprep.subr.mxu0 0.0
    %427 = vmatpush1.msra.mxu0 0.0
    %428 = vmatprep.subr.mxu0 0.0
    %429 = vmatpush1.msra.mxu0 0.0
    %430 = vmatprep.mubr.f32.mxu0 0.0
    %v431 = vand.u32 %v75, 4294901760
    %v432 = vsub.f32 %v75, %v431
    %433 = vmatmul.mubr.f32.gmra.mrb[0].mxu0 %v432
    %v434 = vpop.f32.mrb[0].mxu0
    %v435 = vadd.f32 %v331, %v434
    %v436 = vpop.f32.mrb[0].mxu0
    %437 = vdwg.mxu0
    %438 = vmatprep.subr.mxu0 0.0
    %v439 = vand.u32 %v76, 4294901760
    %440 = vmatpush1.msra.mxu0 %v439
    %441 = vmatprep.subr.mxu0 0.0
    %v442 = vand.u32 %v77, 4294901760
    %443 = vmatpush1.msra.mxu0 %v442
    %444 = vmatprep.subr.mxu0 0.0
    %v445 = vand.u32 %v78, 4294901760
    %446 = vmatpush1.msra.mxu0 %v445
    %447 = vmatprep.subr.mxu0 0.0
    %v448 = vand.u32 %v79, 4294901760
    %449 = vmatpush1.msra.mxu0 %v448
    %450 = vmatprep.subr.mxu0 0.0
    %v451 = vand.u32 %v80, 4294901760
    %452 = vmatpush1.msra.mxu0 %v451
    %453 = vmatprep.subr.mxu0 0.0
    %v454 = vand.u32 %v81, 4294901760
    %455 = vmatpush1.msra.mxu0 %v454
    %456 = vmatprep.subr.mxu0 0.0
    %v457 = vand.u32 %v82, 4294901760
    %458 = vmatpush1.msra.mxu0 %v457
    %459 = vmatprep.subr.mxu0 0.0
    %v460 = vand.u32 %v83, 4294901760
    %461 = vmatpush1.msra.mxu0 %v460
    %462 = vmatprep.subr.mxu0 0.0
    %v463 = vand.u32 %v84, 4294901760
    %464 = vmatpush1.msra.mxu0 %v463
    %465 = vmatprep.subr.mxu0 0.0
    %v466 = vand.u32 %v85, 4294901760
    %467 = vmatpush1.msra.mxu0 %v466
    %468 = vmatprep.subr.mxu0 0.0
    %v469 = vand.u32 %v86, 4294901760
    %470 = vmatpush1.msra.mxu0 %v469
    %471 = vmatprep.subr.mxu0 0.0
    %v472 = vand.u32 %v87, 4294901760
    %473 = vmatpush1.msra.mxu0 %v472
    %474 = vmatprep.subr.mxu0 0.0
    %v475 = vand.u32 %v88, 4294901760
    %476 = vmatpush1.msra.mxu0 %v475
    %477 = vmatprep.subr.mxu0 0.0
    %v478 = vand.u32 %v89, 4294901760
    %479 = vmatpush1.msra.mxu0 %v478
    %480 = vmatprep.subr.mxu0 0.0
    %v481 = vand.u32 %v90, 4294901760
    %482 = vmatpush1.msra.mxu0 %v481
    %483 = vmatprep.subr.mxu0 0.0
    %v484 = vand.u32 %v91, 4294901760
    %485 = vmatpush1.msra.mxu0 %v484
    %486 = vmatprep.subr.mxu0 0.0
    %487 = vmatpush1.msra.mxu0 0.0
    %488 = vmatprep.subr.mxu0 0.0
    %489 = vmatpush1.msra.mxu0 0.0
    %490 = vmatprep.subr.mxu0 0.0
    %491 = vmatpush1.msra.mxu0 0.0
    %492 = vmatprep.subr.mxu0 0.0
    %493 = vmatpush1.msra.mxu0 0.0
    %494 = vmatprep.subr.mxu0 0.0
    %495 = vmatpush1.msra.mxu0 0.0
    %496 = vmatprep.subr.mxu0 0.0
    %497 = vmatpush1.msra.mxu0 0.0
    %498 = vmatprep.subr.mxu0 0.0
    %499 = vmatpush1.msra.mxu0 0.0
    %500 = vmatprep.subr.mxu0 0.0
    %501 = vmatpush1.msra.mxu0 0.0
    %502 = vmatprep.subr.mxu0 0.0
    %503 = vmatpush1.msra.mxu0 0.0
    %504 = vmatprep.subr.mxu0 0.0
    %505 = vmatpush1.msra.mxu0 0.0
    %506 = vmatprep.subr.mxu0 0.0
    %507 = vmatpush1.msra.mxu0 0.0
    %508 = vmatprep.subr.mxu0 0.0
    %509 = vmatpush1.msra.mxu0 0.0
    %510 = vmatprep.subr.mxu0 0.0
    %511 = vmatpush1.msra.mxu0 0.0
    %512 = vmatprep.subr.mxu0 0.0
    %513 = vmatpush1.msra.mxu0 0.0
    %514 = vmatprep.subr.mxu0 0.0
    %515 = vmatpush1.msra.mxu0 0.0
    %516 = vmatprep.subr.mxu0 0.0
    %517 = vmatpush1.msra.mxu0 0.0
    %518 = vmatprep.mubr.f32.mxu0 0.0
    %v519 = vand.u32 %v75, 4294901760
    %v520 = vsub.f32 %v75, %v519
    %v521 = vand.u32 %v520, 4294901760
    %522 = vmatmul.mubr.f32.gmra.mrb[0].mxu0 %v521
    %v523 = vpop.f32.mrb[0].mxu0
    %v524 = vadd.f32 %v435, %v523
    %v525 = vpop.f32.mrb[0].mxu0
    %526 = vdwg.mxu0
    %527 = vmatprep.subr.mxu0 0.0
    %v528 = vand.u32 %v76, 4294901760
    %v529 = vsub.f32 %v76, %v528
    %v530 = vand.u32 %v529, 4294901760
    %531 = vmatpush1.msra.mxu0 %v530
    %532 = vmatprep.subr.mxu0 0.0
    %v533 = vand.u32 %v77, 4294901760
    %v534 = vsub.f32 %v77, %v533
    %v535 = vand.u32 %v534, 4294901760
    %536 = vmatpush1.msra.mxu0 %v535
    %537 = vmatprep.subr.mxu0 0.0
    %v538 = vand.u32 %v78, 4294901760
    %v539 = vsub.f32 %v78, %v538
    %v540 = vand.u32 %v539, 4294901760
    %541 = vmatpush1.msra.mxu0 %v540
    %542 = vmatprep.subr.mxu0 0.0
    %v543 = vand.u32 %v79, 4294901760
    %v544 = vsub.f32 %v79, %v543
    %v545 = vand.u32 %v544, 4294901760
    %546 = vmatpush1.msra.mxu0 %v545
    %547 = vmatprep.subr.mxu0 0.0
    %v548 = vand.u32 %v80, 4294901760
    %v549 = vsub.f32 %v80, %v548
    %v550 = vand.u32 %v549, 4294901760
    %551 = vmatpush1.msra.mxu0 %v550
    %552 = vmatprep.subr.mxu0 0.0
    %v553 = vand.u32 %v81, 4294901760
    %v554 = vsub.f32 %v81, %v553
    %v555 = vand.u32 %v554, 4294901760
    %556 = vmatpush1.msra.mxu0 %v555
    %557 = vmatprep.subr.mxu0 0.0
    %v558 = vand.u32 %v82, 4294901760
    %v559 = vsub.f32 %v82, %v558
    %v560 = vand.u32 %v559, 4294901760
    %561 = vmatpush1.msra.mxu0 %v560
    %562 = vmatprep.subr.mxu0 0.0
    %v563 = vand.u32 %v83, 4294901760
    %v564 = vsub.f32 %v83, %v563
    %v565 = vand.u32 %v564, 4294901760
    %566 = vmatpush1.msra.mxu0 %v565
    %567 = vmatprep.subr.mxu0 0.0
    %v568 = vand.u32 %v84, 4294901760
    %v569 = vsub.f32 %v84, %v568
    %v570 = vand.u32 %v569, 4294901760
    %571 = vmatpush1.msra.mxu0 %v570
    %572 = vmatprep.subr.mxu0 0.0
    %v573 = vand.u32 %v85, 4294901760
    %v574 = vsub.f32 %v85, %v573
    %v575 = vand.u32 %v574, 4294901760
    %576 = vmatpush1.msra.mxu0 %v575
    %577 = vmatprep.subr.mxu0 0.0
    %v578 = vand.u32 %v86, 4294901760
    %v579 = vsub.f32 %v86, %v578
    %v580 = vand.u32 %v579, 4294901760
    %581 = vmatpush1.msra.mxu0 %v580
    %582 = vmatprep.subr.mxu0 0.0
    %v583 = vand.u32 %v87, 4294901760
    %v584 = vsub.f32 %v87, %v583
    %v585 = vand.u32 %v584, 4294901760
    %586 = vmatpush1.msra.mxu0 %v585
    %587 = vmatprep.subr.mxu0 0.0
    %v588 = vand.u32 %v88, 4294901760
    %v589 = vsub.f32 %v88, %v588
    %v590 = vand.u32 %v589, 4294901760
    %591 = vmatpush1.msra.mxu0 %v590
    %592 = vmatprep.subr.mxu0 0.0
    %v593 = vand.u32 %v89, 4294901760
    %v594 = vsub.f32 %v89, %v593
    %v595 = vand.u32 %v594, 4294901760
    %596 = vmatpush1.msra.mxu0 %v595
    %597 = vmatprep.subr.mxu0 0.0
    %v598 = vand.u32 %v90, 4294901760
    %v599 = vsub.f32 %v90, %v598
    %v600 = vand.u32 %v599, 4294901760
    %601 = vmatpush1.msra.mxu0 %v600
    %602 = vmatprep.subr.mxu0 0.0
    %v603 = vand.u32 %v91, 4294901760
    %v604 = vsub.f32 %v91, %v603
    %v605 = vand.u32 %v604, 4294901760
    %606 = vmatpush1.msra.mxu0 %v605
    %607 = vmatprep.subr.mxu0 0.0
    %608 = vmatpush1.msra.mxu0 0.0
    %609 = vmatprep.subr.mxu0 0.0
    %610 = vmatpush1.msra.mxu0 0.0
    %611 = vmatprep.subr.mxu0 0.0
    %612 = vmatpush1.msra.mxu0 0.0
    %613 = vmatprep.subr.mxu0 0.0
    %614 = vmatpush1.msra.mxu0 0.0
    %615 = vmatprep.subr.mxu0 0.0
    %616 = vmatpush1.msra.mxu0 0.0
    %617 = vmatprep.subr.mxu0 0.0
    %618 = vmatpush1.msra.mxu0 0.0
    %619 = vmatprep.subr.mxu0 0.0
    %620 = vmatpush1.msra.mxu0 0.0
    %621 = vmatprep.subr.mxu0 0.0
    %622 = vmatpush1.msra.mxu0 0.0
    %623 = vmatprep.subr.mxu0 0.0
    %624 = vmatpush1.msra.mxu0 0.0
    %625 = vmatprep.subr.mxu0 0.0
    %626 = vmatpush1.msra.mxu0 0.0
    %627 = vmatprep.subr.mxu0 0.0
    %628 = vmatpush1.msra.mxu0 0.0
    %629 = vmatprep.subr.mxu0 0.0
    %630 = vmatpush1.msra.mxu0 0.0
    %631 = vmatprep.subr.mxu0 0.0
    %632 = vmatpush1.msra.mxu0 0.0
    %633 = vmatprep.subr.mxu0 0.0
    %634 = vmatpush1.msra.mxu0 0.0
    %635 = vmatprep.subr.mxu0 0.0
    %636 = vmatpush1.msra.mxu0 0.0
    %637 = vmatprep.subr.mxu0 0.0
    %638 = vmatpush1.msra.mxu0 0.0
    %639 = vmatprep.mubr.f32.mxu0 0.0
    %v640 = vand.u32 %v75, 4294901760
    %641 = vmatmul.mubr.f32.gmra.mrb[0].mxu0 %v640
    %v642 = vpop.f32.mrb[0].mxu0
    %v643 = vadd.f32 %v524, %v642
    %v644 = vpop.f32.mrb[0].mxu0
    %645 = vdwg.mxu0
    %646 = vmatprep.subr.mxu0 0.0
    %v647 = vand.u32 %v76, 4294901760
    %648 = vmatpush1.msra.mxu0 %v647
    %649 = vmatprep.subr.mxu0 0.0
    %v650 = vand.u32 %v77, 4294901760
    %651 = vmatpush1.msra.mxu0 %v650
    %652 = vmatprep.subr.mxu0 0.0
    %v653 = vand.u32 %v78, 4294901760
    %654 = vmatpush1.msra.mxu0 %v653
    %655 = vmatprep.subr.mxu0 0.0
    %v656 = vand.u32 %v79, 4294901760
    %657 = vmatpush1.msra.mxu0 %v656
    %658 = vmatprep.subr.mxu0 0.0
    %v659 = vand.u32 %v80, 4294901760
    %660 = vmatpush1.msra.mxu0 %v659
    %661 = vmatprep.subr.mxu0 0.0
    %v662 = vand.u32 %v81, 4294901760
    %663 = vmatpush1.msra.mxu0 %v662
    %664 = vmatprep.subr.mxu0 0.0
    %v665 = vand.u32 %v82, 4294901760
    %666 = vmatpush1.msra.mxu0 %v665
    %667 = vmatprep.subr.mxu0 0.0
    %v668 = vand.u32 %v83, 4294901760
    %669 = vmatpush1.msra.mxu0 %v668
    %670 = vmatprep.subr.mxu0 0.0
    %v671 = vand.u32 %v84, 4294901760
    %672 = vmatpush1.msra.mxu0 %v671
    %673 = vmatprep.subr.mxu0 0.0
    %v674 = vand.u32 %v85, 4294901760
    %675 = vmatpush1.msra.mxu0 %v674
    %676 = vmatprep.subr.mxu0 0.0
    %v677 = vand.u32 %v86, 4294901760
    %678 = vmatpush1.msra.mxu0 %v677
    %679 = vmatprep.subr.mxu0 0.0
    %v680 = vand.u32 %v87, 4294901760
    %681 = vmatpush1.msra.mxu0 %v680
    %682 = vmatprep.subr.mxu0 0.0
    %v683 = vand.u32 %v88, 4294901760
    %684 = vmatpush1.msra.mxu0 %v683
    %685 = vmatprep.subr.mxu0 0.0
    %v686 = vand.u32 %v89, 4294901760
    %687 = vmatpush1.msra.mxu0 %v686
    %688 = vmatprep.subr.mxu0 0.0
    %v689 = vand.u32 %v90, 4294901760
    %690 = vmatpush1.msra.mxu0 %v689
    %691 = vmatprep.subr.mxu0 0.0
    %v692 = vand.u32 %v91, 4294901760
    %693 = vmatpush1.msra.mxu0 %v692
    %694 = vmatprep.subr.mxu0 0.0
    %695 = vmatpush1.msra.mxu0 0.0
    %696 = vmatprep.subr.mxu0 0.0
    %697 = vmatpush1.msra.mxu0 0.0
    %698 = vmatprep.subr.mxu0 0.0
    %699 = vmatpush1.msra.mxu0 0.0
    %700 = vmatprep.subr.mxu0 0.0
    %701 = vmatpush1.msra.mxu0 0.0
    %702 = vmatprep.subr.mxu0 0.0
    %703 = vmatpush1.msra.mxu0 0.0
    %704 = vmatprep.subr.mxu0 0.0
    %705 = vmatpush1.msra.mxu0 0.0
    %706 = vmatprep.subr.mxu0 0.0
    %707 = vmatpush1.msra.mxu0 0.0
    %708 = vmatprep.subr.mxu0 0.0
    %709 = vmatpush1.msra.mxu0 0.0
    %710 = vmatprep.subr.mxu0 0.0
    %711 = vmatpush1.msra.mxu0 0.0
    %712 = vmatprep.subr.mxu0 0.0
    %713 = vmatpush1.msra.mxu0 0.0
    %714 = vmatprep.subr.mxu0 0.0
    %715 = vmatpush1.msra.mxu0 0.0
    %716 = vmatprep.subr.mxu0 0.0
    %717 = vmatpush1.msra.mxu0 0.0
    %718 = vmatprep.subr.mxu0 0.0
    %719 = vmatpush1.msra.mxu0 0.0
    %720 = vmatprep.subr.mxu0 0.0
    %721 = vmatpush1.msra.mxu0 0.0
    %722 = vmatprep.subr.mxu0 0.0
    %723 = vmatpush1.msra.mxu0 0.0
    %724 = vmatprep.subr.mxu0 0.0
    %725 = vmatpush1.msra.mxu0 0.0
    %726 = vmatprep.mubr.f32.mxu0 0.0
    %v727 = vand.u32 %v75, 4294901760
    %728 = vmatmul.mubr.f32.gmra.mrb[0].mxu0 %v727
    %v729 = vpop.f32.mrb[0].mxu0
    %v730 = vadd.f32 %v643, %v729
    %v731 = vpop.f32.mrb[0].mxu0
    %732 = vdwg.mxu0
    %v733 = vmul.f32 %v730, 0.17677669
    %734 = vst [vmem:[#allocation10] sm:$0xff] %v733
    %v735 = vld [vmem:[#allocation7] sm:$0xff]
    %v736 = vld [vmem:[#allocation7 + $0x8] sm:$0xff]
    %v737 = vld [vmem:[#allocation7 + $0x10] sm:$0xff]
    %v738 = vld [vmem:[#allocation7 + $0x18] sm:$0xff]
    %v739 = vld [vmem:[#allocation7 + $0x20] sm:$0xff]
    %v740 = vld [vmem:[#allocation7 + $0x28] sm:$0xff]
    %v741 = vld [vmem:[#allocation7 + $0x30] sm:$0xff]
    %v742 = vld [vmem:[#allocation7 + $0x38] sm:$0xff]
    %v743 = vld [vmem:[#allocation7 + $0x40] sm:$0xff]
    %v744 = vld [vmem:[#allocation7 + $0x48] sm:$0xff]
    %v745 = vld [vmem:[#allocation7 + $0x50] sm:$0xff]
    %v746 = vld [vmem:[#allocation7 + $0x58] sm:$0xff]
    %v747 = vld [vmem:[#allocation7 + $0x60] sm:$0xff]
    %v748 = vld [vmem:[#allocation7 + $0x68] sm:$0xff]
    %v749 = vld [vmem:[#allocation7 + $0x70] sm:$0xff]
    %v750 = vld [vmem:[#allocation7 + $0x78] sm:$0xff]
    %751 = vmatprep.subr.mxu0 0.0
    %v752 = vand.u32 %v735, 4294901760
    %753 = vmatpush1.msra.mxu0 %v752
    %754 = vmatprep.subr.mxu0 0.0
    %v755 = vand.u32 %v736, 4294901760
    %756 = vmatpush1.msra.mxu0 %v755
    %757 = vmatprep.subr.mxu0 0.0
    %v758 = vand.u32 %v737, 4294901760
    %759 = vmatpush1.msra.mxu0 %v758
    %760 = vmatprep.subr.mxu0 0.0
    %v761 = vand.u32 %v738, 4294901760
    %762 = vmatpush1.msra.mxu0 %v761
    %763 = vmatprep.subr.mxu0 0.0
    %v764 = vand.u32 %v739, 4294901760
    %765 = vmatpush1.msra.mxu0 %v764
    %766 = vmatprep.subr.mxu0 0.0
    %v767 = vand.u32 %v740, 4294901760
    %768 = vmatpush1.msra.mxu0 %v767
    %769 = vmatprep.subr.mxu0 0.0
    %v770 = vand.u32 %v741, 4294901760
    %771 = vmatpush1.msra.mxu0 %v770
    %772 = vmatprep.subr.mxu0 0.0
    %v773 = vand.u32 %v742, 4294901760
    %774 = vmatpush1.msra.mxu0 %v773
    %775 = vmatprep.subr.mxu0 0.0
    %v776 = vand.u32 %v743, 4294901760
    %777 = vmatpush1.msra.mxu0 %v776
    %778 = vmatprep.subr.mxu0 0.0
    %v779 = vand.u32 %v744, 4294901760
    %780 = vmatpush1.msra.mxu0 %v779
    %781 = vmatprep.subr.mxu0 0.0
    %v782 = vand.u32 %v745, 4294901760
    %783 = vmatpush1.msra.mxu0 %v782
    %784 = vmatprep.subr.mxu0 0.0
    %v785 = vand.u32 %v746, 4294901760
    %786 = vmatpush1.msra.mxu0 %v785
    %787 = vmatprep.subr.mxu0 0.0
    %v788 = vand.u32 %v747, 4294901760
    %789 = vmatpush1.msra.mxu0 %v788
    %790 = vmatprep.subr.mxu0 0.0
    %v791 = vand.u32 %v748, 4294901760
    %792 = vmatpush1.msra.mxu0 %v791
    %793 = vmatprep.subr.mxu0 0.0
    %v794 = vand.u32 %v749, 4294901760
    %795 = vmatpush1.msra.mxu0 %v794
    %796 = vmatprep.subr.mxu0 0.0
    %v797 = vand.u32 %v750, 4294901760
    %798 = vmatpush1.msra.mxu0 %v797
    %799 = vmatprep.subr.mxu0 0.0
    %800 = vmatpush1.msra.mxu0 0.0
    %801 = vmatprep.subr.mxu0 0.0
    %802 = vmatpush1.msra.mxu0 0.0
    %803 = vmatprep.subr.mxu0 0.0
    %804 = vmatpush1.msra.mxu0 0.0
    %805 = vmatprep.subr.mxu0 0.0
    %806 = vmatpush1.msra.mxu0 0.0
    %807 = vmatprep.subr.mxu0 0.0
    %808 = vmatpush1.msra.mxu0 0.0
    %809 = vmatprep.subr.mxu0 0.0
    %810 = vmatpush1.msra.mxu0 0.0
    %811 = vmatprep.subr.mxu0 0.0
    %812 = vmatpush1.msra.mxu0 0.0
    %813 = vmatprep.subr.mxu0 0.0
    %814 = vmatpush1.msra.mxu0 0.0
    %815 = vmatprep.subr.mxu0 0.0
    %816 = vmatpush1.msra.mxu0 0.0
    %817 = vmatprep.subr.mxu0 0.0
    %818 = vmatpush1.msra.mxu0 0.0
    %819 = vmatprep.subr.mxu0 0.0
    %820 = vmatpush1.msra.mxu0 0.0
    %821 = vmatprep.subr.mxu0 0.0
    %822 = vmatpush1.msra.mxu0 0.0
    %823 = vmatprep.subr.mxu0 0.0
    %824 = vmatpush1.msra.mxu0 0.0
    %825 = vmatprep.subr.mxu0 0.0
    %826 = vmatpush1.msra.mxu0 0.0
    %827 = vmatprep.subr.mxu0 0.0
    %828 = vmatpush1.msra.mxu0 0.0
    %829 = vmatprep.subr.mxu0 0.0
    %830 = vmatpush1.msra.mxu0 0.0
    %831 = vmatprep.mubr.f32.mxu0 0.0
    %v832 = vand.u32 %v75, 4294901760
    %v833 = vsub.f32 %v75, %v832
    %v834 = vand.u32 %v833, 4294901760
    %v835 = vsub.f32 %v833, %v834
    %v836 = vand.u32 %v835, 4294901760
    %837 = vmatmul.mubr.f32.gmra.mrb[0].mxu0 %v836
    %v838 = vpop.f32.mrb[0].mxu0
    %v839 = vadd.f32 0.0, %v838
    %v840 = vpop.f32.mrb[0].mxu0
    %841 = vdwg.mxu0
    %842 = vmatprep.subr.mxu0 0.0
    %v843 = vand.u32 %v735, 4294901760
    %v844 = vsub.f32 %v735, %v843
    %v845 = vand.u32 %v844, 4294901760
    %v846 = vsub.f32 %v844, %v845
    %v847 = vand.u32 %v846, 4294901760
    %848 = vmatpush1.msra.mxu0 %v847
    %849 = vmatprep.subr.mxu0 0.0
    %v850 = vand.u32 %v736, 4294901760
    %v851 = vsub.f32 %v736, %v850
    %v852 = vand.u32 %v851, 4294901760
    %v853 = vsub.f32 %v851, %v852
    %v854 = vand.u32 %v853, 4294901760
    %855 = vmatpush1.msra.mxu0 %v854
    %856 = vmatprep.subr.mxu0 0.0
    %v857 = vand.u32 %v737, 4294901760
    %v858 = vsub.f32 %v737, %v857
    %v859 = vand.u32 %v858, 4294901760
    %v860 = vsub.f32 %v858, %v859
    %v861 = vand.u32 %v860, 4294901760
    %862 = vmatpush1.msra.mxu0 %v861
    %863 = vmatprep.subr.mxu0 0.0
    %v864 = vand.u32 %v738, 4294901760
    %v865 = vsub.f32 %v738, %v864
    %v866 = vand.u32 %v865, 4294901760
    %v867 = vsub.f32 %v865, %v866
    %v868 = vand.u32 %v867, 4294901760
    %869 = vmatpush1.msra.mxu0 %v868
    %870 = vmatprep.subr.mxu0 0.0
    %v871 = vand.u32 %v739, 4294901760
    %v872 = vsub.f32 %v739, %v871
    %v873 = vand.u32 %v872, 4294901760
    %v874 = vsub.f32 %v872, %v873
    %v875 = vand.u32 %v874, 4294901760
    %876 = vmatpush1.msra.mxu0 %v875
    %877 = vmatprep.subr.mxu0 0.0
    %v878 = vand.u32 %v740, 4294901760
    %v879 = vsub.f32 %v740, %v878
    %v880 = vand.u32 %v879, 4294901760
    %v881 = vsub.f32 %v879, %v880
    %v882 = vand.u32 %v881, 4294901760
    %883 = vmatpush1.msra.mxu0 %v882
    %884 = vmatprep.subr.mxu0 0.0
    %v885 = vand.u32 %v741, 4294901760
    %v886 = vsub.f32 %v741, %v885
    %v887 = vand.u32 %v886, 4294901760
    %v888 = vsub.f32 %v886, %v887
    %v889 = vand.u32 %v888, 4294901760
    %890 = vmatpush1.msra.mxu0 %v889
    %891 = vmatprep.subr.mxu0 0.0
    %v892 = vand.u32 %v742, 4294901760
    %v893 = vsub.f32 %v742, %v892
    %v894 = vand.u32 %v893, 4294901760
    %v895 = vsub.f32 %v893, %v894
    %v896 = vand.u32 %v895, 4294901760
    %897 = vmatpush1.msra.mxu0 %v896
    %898 = vmatprep.subr.mxu0 0.0
    %v899 = vand.u32 %v743, 4294901760
    %v900 = vsub.f32 %v743, %v899
    %v901 = vand.u32 %v900, 4294901760
    %v902 = vsub.f32 %v900, %v901
    %v903 = vand.u32 %v902, 4294901760
    %904 = vmatpush1.msra.mxu0 %v903
    %905 = vmatprep.subr.mxu0 0.0
    %v906 = vand.u32 %v744, 4294901760
    %v907 = vsub.f32 %v744, %v906
    %v908 = vand.u32 %v907, 4294901760
    %v909 = vsub.f32 %v907, %v908
    %v910 = vand.u32 %v909, 4294901760
    %911 = vmatpush1.msra.mxu0 %v910
    %912 = vmatprep.subr.mxu0 0.0
    %v913 = vand.u32 %v745, 4294901760
    %v914 = vsub.f32 %v745, %v913
    %v915 = vand.u32 %v914, 4294901760
    %v916 = vsub.f32 %v914, %v915
    %v917 = vand.u32 %v916, 4294901760
    %918 = vmatpush1.msra.mxu0 %v917
    %919 = vmatprep.subr.mxu0 0.0
    %v920 = vand.u32 %v746, 4294901760
    %v921 = vsub.f32 %v746, %v920
    %v922 = vand.u32 %v921, 4294901760
    %v923 = vsub.f32 %v921, %v922
    %v924 = vand.u32 %v923, 4294901760
    %925 = vmatpush1.msra.mxu0 %v924
    %926 = vmatprep.subr.mxu0 0.0
    %v927 = vand.u32 %v747, 4294901760
    %v928 = vsub.f32 %v747, %v927
    %v929 = vand.u32 %v928, 4294901760
    %v930 = vsub.f32 %v928, %v929
    %v931 = vand.u32 %v930, 4294901760
    %932 = vmatpush1.msra.mxu0 %v931
    %933 = vmatprep.subr.mxu0 0.0
    %v934 = vand.u32 %v748, 4294901760
    %v935 = vsub.f32 %v748, %v934
    %v936 = vand.u32 %v935, 4294901760
    %v937 = vsub.f32 %v935, %v936
    %v938 = vand.u32 %v937, 4294901760
    %939 = vmatpush1.msra.mxu0 %v938
    %940 = vmatprep.subr.mxu0 0.0
    %v941 = vand.u32 %v749, 4294901760
    %v942 = vsub.f32 %v749, %v941
    %v943 = vand.u32 %v942, 4294901760
    %v944 = vsub.f32 %v942, %v943
    %v945 = vand.u32 %v944, 4294901760
    %946 = vmatpush1.msra.mxu0 %v945
    %947 = vmatprep.subr.mxu0 0.0
    %v948 = vand.u32 %v750, 4294901760
    %v949 = vsub.f32 %v750, %v948
    %v950 = vand.u32 %v949, 4294901760
    %v951 = vsub.f32 %v949, %v950
    %v952 = vand.u32 %v951, 4294901760
    %953 = vmatpush1.msra.mxu0 %v952
    %954 = vmatprep.subr.mxu0 0.0
    %955 = vmatpush1.msra.mxu0 0.0
    %956 = vmatprep.subr.mxu0 0.0
    %957 = vmatpush1.msra.mxu0 0.0
    %958 = vmatprep.subr.mxu0 0.0
    %959 = vmatpush1.msra.mxu0 0.0
    %960 = vmatprep.subr.mxu0 0.0
    %961 = vmatpush1.msra.mxu0 0.0
    %962 = vmatprep.subr.mxu0 0.0
    %963 = vmatpush1.msra.mxu0 0.0
    %964 = vmatprep.subr.mxu0 0.0
    %965 = vmatpush1.msra.mxu0 0.0
    %966 = vmatprep.subr.mxu0 0.0
    %967 = vmatpush1.msra.mxu0 0.0
    %968 = vmatprep.subr.mxu0 0.0
    %969 = vmatpush1.msra.mxu0 0.0
    %970 = vmatprep.subr.mxu0 0.0
    %971 = vmatpush1.msra.mxu0 0.0
    %972 = vmatprep.subr.mxu0 0.0
    %973 = vmatpush1.msra.mxu0 0.0
    %974 = vmatprep.subr.mxu0 0.0
    %975 = vmatpush1.msra.mxu0 0.0
    %976 = vmatprep.subr.mxu0 0.0
    %977 = vmatpush1.msra.mxu0 0.0
    %978 = vmatprep.subr.mxu0 0.0
    %979 = vmatpush1.msra.mxu0 0.0
    %980 = vmatprep.subr.mxu0 0.0
    %981 = vmatpush1.msra.mxu0 0.0
    %982 = vmatprep.subr.mxu0 0.0
    %983 = vmatpush1.msra.mxu0 0.0
    %984 = vmatprep.subr.mxu0 0.0
    %985 = vmatpush1.msra.mxu0 0.0
    %986 = vmatprep.mubr.f32.mxu0 0.0
    %v987 = vand.u32 %v75, 4294901760
    %988 = vmatmul.mubr.f32.gmra.mrb[0].mxu0 %v987
    %v989 = vpop.f32.mrb[0].mxu0
    %v990 = vadd.f32 %v839, %v989
    %v991 = vpop.f32.mrb[0].mxu0
    %992 = vdwg.mxu0
    %993 = vmatprep.subr.mxu0 0.0
    %v994 = vand.u32 %v735, 4294901760
    %v995 = vsub.f32 %v735, %v994
    %996 = vmatpush1.msra.mxu0 %v995
    %997 = vmatprep.subr.mxu0 0.0
    %v998 = vand.u32 %v736, 4294901760
    %v999 = vsub.f32 %v736, %v998
    %1000 = vmatpush1.msra.mxu0 %v999
    %1001 = vmatprep.subr.mxu0 0.0
    %v1002 = vand.u32 %v737, 4294901760
    %v1003 = vsub.f32 %v737, %v1002
    %1004 = vmatpush1.msra.mxu0 %v1003
    %1005 = vmatprep.subr.mxu0 0.0
    %v1006 = vand.u32 %v738, 4294901760
    %v1007 = vsub.f32 %v738, %v1006
    %1008 = vmatpush1.msra.mxu0 %v1007
    %1009 = vmatprep.subr.mxu0 0.0
    %v1010 = vand.u32 %v739, 4294901760
    %v1011 = vsub.f32 %v739, %v1010
    %1012 = vmatpush1.msra.mxu0 %v1011
    %1013 = vmatprep.subr.mxu0 0.0
    %v1014 = vand.u32 %v740, 4294901760
    %v1015 = vsub.f32 %v740, %v1014
    %1016 = vmatpush1.msra.mxu0 %v1015
    %1017 = vmatprep.subr.mxu0 0.0
    %v1018 = vand.u32 %v741, 4294901760
    %v1019 = vsub.f32 %v741, %v1018
    %1020 = vmatpush1.msra.mxu0 %v1019
    %1021 = vmatprep.subr.mxu0 0.0
    %v1022 = vand.u32 %v742, 4294901760
    %v1023 = vsub.f32 %v742, %v1022
    %1024 = vmatpush1.msra.mxu0 %v1023
    %1025 = vmatprep.subr.mxu0 0.0
    %v1026 = vand.u32 %v743, 4294901760
    %v1027 = vsub.f32 %v743, %v1026
    %1028 = vmatpush1.msra.mxu0 %v1027
    %1029 = vmatprep.subr.mxu0 0.0
    %v1030 = vand.u32 %v744, 4294901760
    %v1031 = vsub.f32 %v744, %v1030
    %1032 = vmatpush1.msra.mxu0 %v1031
    %1033 = vmatprep.subr.mxu0 0.0
    %v1034 = vand.u32 %v745, 4294901760
    %v1035 = vsub.f32 %v745, %v1034
    %1036 = vmatpush1.msra.mxu0 %v1035
    %1037 = vmatprep.subr.mxu0 0.0
    %v1038 = vand.u32 %v746, 4294901760
    %v1039 = vsub.f32 %v746, %v1038
    %1040 = vmatpush1.msra.mxu0 %v1039
    %1041 = vmatprep.subr.mxu0 0.0
    %v1042 = vand.u32 %v747, 4294901760
    %v1043 = vsub.f32 %v747, %v1042
    %1044 = vmatpush1.msra.mxu0 %v1043
    %1045 = vmatprep.subr.mxu0 0.0
    %v1046 = vand.u32 %v748, 4294901760
    %v1047 = vsub.f32 %v748, %v1046
    %1048 = vmatpush1.msra.mxu0 %v1047
    %1049 = vmatprep.subr.mxu0 0.0
    %v1050 = vand.u32 %v749, 4294901760
    %v1051 = vsub.f32 %v749, %v1050
    %1052 = vmatpush1.msra.mxu0 %v1051
    %1053 = vmatprep.subr.mxu0 0.0
    %v1054 = vand.u32 %v750, 4294901760
    %v1055 = vsub.f32 %v750, %v1054
    %1056 = vmatpush1.msra.mxu0 %v1055
    %1057 = vmatprep.subr.mxu0 0.0
    %1058 = vmatpush1.msra.mxu0 0.0
    %1059 = vmatprep.subr.mxu0 0.0
    %1060 = vmatpush1.msra.mxu0 0.0
    %1061 = vmatprep.subr.mxu0 0.0
    %1062 = vmatpush1.msra.mxu0 0.0
    %1063 = vmatprep.subr.mxu0 0.0
    %1064 = vmatpush1.msra.mxu0 0.0
    %1065 = vmatprep.subr.mxu0 0.0
    %1066 = vmatpush1.msra.mxu0 0.0
    %1067 = vmatprep.subr.mxu0 0.0
    %1068 = vmatpush1.msra.mxu0 0.0
    %1069 = vmatprep.subr.mxu0 0.0
    %1070 = vmatpush1.msra.mxu0 0.0
    %1071 = vmatprep.subr.mxu0 0.0
    %1072 = vmatpush1.msra.mxu0 0.0
    %1073 = vmatprep.subr.mxu0 0.0
    %1074 = vmatpush1.msra.mxu0 0.0
    %1075 = vmatprep.subr.mxu0 0.0
    %1076 = vmatpush1.msra.mxu0 0.0
    %1077 = vmatprep.subr.mxu0 0.0
    %1078 = vmatpush1.msra.mxu0 0.0
    %1079 = vmatprep.subr.mxu0 0.0
    %1080 = vmatpush1.msra.mxu0 0.0
    %1081 = vmatprep.subr.mxu0 0.0
    %1082 = vmatpush1.msra.mxu0 0.0
    %1083 = vmatprep.subr.mxu0 0.0
    %1084 = vmatpush1.msra.mxu0 0.0
    %1085 = vmatprep.subr.mxu0 0.0
    %1086 = vmatpush1.msra.mxu0 0.0
    %1087 = vmatprep.subr.mxu0 0.0
    %1088 = vmatpush1.msra.mxu0 0.0
    %1089 = vmatprep.mubr.f32.mxu0 0.0
    %v1090 = vand.u32 %v75, 4294901760
    %v1091 = vsub.f32 %v75, %v1090
    %1092 = vmatmul.mubr.f32.gmra.mrb[0].mxu0 %v1091
    %v1093 = vpop.f32.mrb[0].mxu0
    %v1094 = vadd.f32 %v990, %v1093
    %v1095 = vpop.f32.mrb[0].mxu0
    %1096 = vdwg.mxu0
    %1097 = vmatprep.subr.mxu0 0.0
    %v1098 = vand.u32 %v735, 4294901760
    %1099 = vmatpush1.msra.mxu0 %v1098
    %1100 = vmatprep.subr.mxu0 0.0
    %v1101 = vand.u32 %v736, 4294901760
    %1102 = vmatpush1.msra.mxu0 %v1101
    %1103 = vmatprep.subr.mxu0 0.0
    %v1104 = vand.u32 %v737, 4294901760
    %1105 = vmatpush1.msra.mxu0 %v1104
    %1106 = vmatprep.subr.mxu0 0.0
    %v1107 = vand.u32 %v738, 4294901760
    %1108 = vmatpush1.msra.mxu0 %v1107
    %1109 = vmatprep.subr.mxu0 0.0
    %v1110 = vand.u32 %v739, 4294901760
    %1111 = vmatpush1.msra.mxu0 %v1110
    %1112 = vmatprep.subr.mxu0 0.0
    %v1113 = vand.u32 %v740, 4294901760
    %1114 = vmatpush1.msra.mxu0 %v1113
    %1115 = vmatprep.subr.mxu0 0.0
    %v1116 = vand.u32 %v741, 4294901760
    %1117 = vmatpush1.msra.mxu0 %v1116
    %1118 = vmatprep.subr.mxu0 0.0
    %v1119 = vand.u32 %v742, 4294901760
    %1120 = vmatpush1.msra.mxu0 %v1119
    %1121 = vmatprep.subr.mxu0 0.0
    %v1122 = vand.u32 %v743, 4294901760
    %1123 = vmatpush1.msra.mxu0 %v1122
    %1124 = vmatprep.subr.mxu0 0.0
    %v1125 = vand.u32 %v744, 4294901760
    %1126 = vmatpush1.msra.mxu0 %v1125
    %1127 = vmatprep.subr.mxu0 0.0
    %v1128 = vand.u32 %v745, 4294901760
    %1129 = vmatpush1.msra.mxu0 %v1128
    %1130 = vmatprep.subr.mxu0 0.0
    %v1131 = vand.u32 %v746, 4294901760
    %1132 = vmatpush1.msra.mxu0 %v1131
    %1133 = vmatprep.subr.mxu0 0.0
    %v1134 = vand.u32 %v747, 4294901760
    %1135 = vmatpush1.msra.mxu0 %v1134
    %1136 = vmatprep.subr.mxu0 0.0
    %v1137 = vand.u32 %v748, 4294901760
    %1138 = vmatpush1.msra.mxu0 %v1137
    %1139 = vmatprep.subr.mxu0 0.0
    %v1140 = vand.u32 %v749, 4294901760
    %1141 = vmatpush1.msra.mxu0 %v1140
    %1142 = vmatprep.subr.mxu0 0.0
    %v1143 = vand.u32 %v750, 4294901760
    %1144 = vmatpush1.msra.mxu0 %v1143
    %1145 = vmatprep.subr.mxu0 0.0
    %1146 = vmatpush1.msra.mxu0 0.0
    %1147 = vmatprep.subr.mxu0 0.0
    %1148 = vmatpush1.msra.mxu0 0.0
    %1149 = vmatprep.subr.mxu0 0.0
    %1150 = vmatpush1.msra.mxu0 0.0
    %1151 = vmatprep.subr.mxu0 0.0
    %1152 = vmatpush1.msra.mxu0 0.0
    %1153 = vmatprep.subr.mxu0 0.0
    %1154 = vmatpush1.msra.mxu0 0.0
    %1155 = vmatprep.subr.mxu0 0.0
    %1156 = vmatpush1.msra.mxu0 0.0
    %1157 = vmatprep.subr.mxu0 0.0
    %1158 = vmatpush1.msra.mxu0 0.0
    %1159 = vmatprep.subr.mxu0 0.0
    %1160 = vmatpush1.msra.mxu0 0.0
    %1161 = vmatprep.subr.mxu0 0.0
    %1162 = vmatpush1.msra.mxu0 0.0
    %1163 = vmatprep.subr.mxu0 0.0
    %1164 = vmatpush1.msra.mxu0 0.0
    %1165 = vmatprep.subr.mxu0 0.0
    %1166 = vmatpush1.msra.mxu0 0.0
    %1167 = vmatprep.subr.mxu0 0.0
    %1168 = vmatpush1.msra.mxu0 0.0
    %1169 = vmatprep.subr.mxu0 0.0
    %1170 = vmatpush1.msra.mxu0 0.0
    %1171 = vmatprep.subr.mxu0 0.0
    %1172 = vmatpush1.msra.mxu0 0.0
    %1173 = vmatprep.subr.mxu0 0.0
    %1174 = vmatpush1.msra.mxu0 0.0
    %1175 = vmatprep.subr.mxu0 0.0
    %1176 = vmatpush1.msra.mxu0 0.0
    %1177 = vmatprep.mubr.f32.mxu0 0.0
    %v1178 = vand.u32 %v75, 4294901760
    %v1179 = vsub.f32 %v75, %v1178
    %v1180 = vand.u32 %v1179, 4294901760
    %1181 = vmatmul.mubr.f32.gmra.mrb[0].mxu0 %v1180
    %v1182 = vpop.f32.mrb[0].mxu0
    %v1183 = vadd.f32 %v1094, %v1182
    %v1184 = vpop.f32.mrb[0].mxu0
    %1185 = vdwg.mxu0
    %1186 = vmatprep.subr.mxu0 0.0
    %v1187 = vand.u32 %v735, 4294901760
    %v1188 = vsub.f32 %v735, %v1187
    %v1189 = vand.u32 %v1188, 4294901760
    %1190 = vmatpush1.msra.mxu0 %v1189
    %1191 = vmatprep.subr.mxu0 0.0
    %v1192 = vand.u32 %v736, 4294901760
    %v1193 = vsub.f32 %v736, %v1192
    %v1194 = vand.u32 %v1193, 4294901760
    %1195 = vmatpush1.msra.mxu0 %v1194
    %1196 = vmatprep.subr.mxu0 0.0
    %v1197 = vand.u32 %v737, 4294901760
    %v1198 = vsub.f32 %v737, %v1197
    %v1199 = vand.u32 %v1198, 4294901760
    %1200 = vmatpush1.msra.mxu0 %v1199
    %1201 = vmatprep.subr.mxu0 0.0
    %v1202 = vand.u32 %v738, 4294901760
    %v1203 = vsub.f32 %v738, %v1202
    %v1204 = vand.u32 %v1203, 4294901760
    %1205 = vmatpush1.msra.mxu0 %v1204
    %1206 = vmatprep.subr.mxu0 0.0
    %v1207 = vand.u32 %v739, 4294901760
    %v1208 = vsub.f32 %v739, %v1207
    %v1209 = vand.u32 %v1208, 4294901760
    %1210 = vmatpush1.msra.mxu0 %v1209
    %1211 = vmatprep.subr.mxu0 0.0
    %v1212 = vand.u32 %v740, 4294901760
    %v1213 = vsub.f32 %v740, %v1212
    %v1214 = vand.u32 %v1213, 4294901760
    %1215 = vmatpush1.msra.mxu0 %v1214
    %1216 = vmatprep.subr.mxu0 0.0
    %v1217 = vand.u32 %v741, 4294901760
    %v1218 = vsub.f32 %v741, %v1217
    %v1219 = vand.u32 %v1218, 4294901760
    %1220 = vmatpush1.msra.mxu0 %v1219
    %1221 = vmatprep.subr.mxu0 0.0
    %v1222 = vand.u32 %v742, 4294901760
    %v1223 = vsub.f32 %v742, %v1222
    %v1224 = vand.u32 %v1223, 4294901760
    %1225 = vmatpush1.msra.mxu0 %v1224
    %1226 = vmatprep.subr.mxu0 0.0
    %v1227 = vand.u32 %v743, 4294901760
    %v1228 = vsub.f32 %v743, %v1227
    %v1229 = vand.u32 %v1228, 4294901760
    %1230 = vmatpush1.msra.mxu0 %v1229
    %1231 = vmatprep.subr.mxu0 0.0
    %v1232 = vand.u32 %v744, 4294901760
    %v1233 = vsub.f32 %v744, %v1232
    %v1234 = vand.u32 %v1233, 4294901760
    %1235 = vmatpush1.msra.mxu0 %v1234
    %1236 = vmatprep.subr.mxu0 0.0
    %v1237 = vand.u32 %v745, 4294901760
    %v1238 = vsub.f32 %v745, %v1237
    %v1239 = vand.u32 %v1238, 4294901760
    %1240 = vmatpush1.msra.mxu0 %v1239
    %1241 = vmatprep.subr.mxu0 0.0
    %v1242 = vand.u32 %v746, 4294901760
    %v1243 = vsub.f32 %v746, %v1242
    %v1244 = vand.u32 %v1243, 4294901760
    %1245 = vmatpush1.msra.mxu0 %v1244
    %1246 = vmatprep.subr.mxu0 0.0
    %v1247 = vand.u32 %v747, 4294901760
    %v1248 = vsub.f32 %v747, %v1247
    %v1249 = vand.u32 %v1248, 4294901760
    %1250 = vmatpush1.msra.mxu0 %v1249
    %1251 = vmatprep.subr.mxu0 0.0
    %v1252 = vand.u32 %v748, 4294901760
    %v1253 = vsub.f32 %v748, %v1252
    %v1254 = vand.u32 %v1253, 4294901760
    %1255 = vmatpush1.msra.mxu0 %v1254
    %1256 = vmatprep.subr.mxu0 0.0
    %v1257 = vand.u32 %v749, 4294901760
    %v1258 = vsub.f32 %v749, %v1257
    %v1259 = vand.u32 %v1258, 4294901760
    %1260 = vmatpush1.msra.mxu0 %v1259
    %1261 = vmatprep.subr.mxu0 0.0
    %v1262 = vand.u32 %v750, 4294901760
    %v1263 = vsub.f32 %v750, %v1262
    %v1264 = vand.u32 %v1263, 4294901760
    %1265 = vmatpush1.msra.mxu0 %v1264
    %1266 = vmatprep.subr.mxu0 0.0
    %1267 = vmatpush1.msra.mxu0 0.0
    %1268 = vmatprep.subr.mxu0 0.0
    %1269 = vmatpush1.msra.mxu0 0.0
    %1270 = vmatprep.subr.mxu0 0.0
    %1271 = vmatpush1.msra.mxu0 0.0
    %1272 = vmatprep.subr.mxu0 0.0
    %1273 = vmatpush1.msra.mxu0 0.0
    %1274 = vmatprep.subr.mxu0 0.0
    %1275 = vmatpush1.msra.mxu0 0.0
    %1276 = vmatprep.subr.mxu0 0.0
    %1277 = vmatpush1.msra.mxu0 0.0
    %1278 = vmatprep.subr.mxu0 0.0
    %1279 = vmatpush1.msra.mxu0 0.0
    %1280 = vmatprep.subr.mxu0 0.0
    %1281 = vmatpush1.msra.mxu0 0.0
    %1282 = vmatprep.subr.mxu0 0.0
    %1283 = vmatpush1.msra.mxu0 0.0
    %1284 = vmatprep.subr.mxu0 0.0
    %1285 = vmatpush1.msra.mxu0 0.0
    %1286 = vmatprep.subr.mxu0 0.0
    %1287 = vmatpush1.msra.mxu0 0.0
    %1288 = vmatprep.subr.mxu0 0.0
    %1289 = vmatpush1.msra.mxu0 0.0
    %1290 = vmatprep.subr.mxu0 0.0
    %1291 = vmatpush1.msra.mxu0 0.0
    %1292 = vmatprep.subr.mxu0 0.0
    %1293 = vmatpush1.msra.mxu0 0.0
    %1294 = vmatprep.subr.mxu0 0.0
    %1295 = vmatpush1.msra.mxu0 0.0
    %1296 = vmatprep.subr.mxu0 0.0
    %1297 = vmatpush1.msra.mxu0 0.0
    %1298 = vmatprep.mubr.f32.mxu0 0.0
    %v1299 = vand.u32 %v75, 4294901760
    %1300 = vmatmul.mubr.f32.gmra.mrb[0].mxu0 %v1299
    %v1301 = vpop.f32.mrb[0].mxu0
    %v1302 = vadd.f32 %v1183, %v1301
    %v1303 = vpop.f32.mrb[0].mxu0
    %1304 = vdwg.mxu0
    %1305 = vmatprep.subr.mxu0 0.0
    %v1306 = vand.u32 %v735, 4294901760
    %1307 = vmatpush1.msra.mxu0 %v1306
    %1308 = vmatprep.subr.mxu0 0.0
    %v1309 = vand.u32 %v736, 4294901760
    %1310 = vmatpush1.msra.mxu0 %v1309
    %1311 = vmatprep.subr.mxu0 0.0
    %v1312 = vand.u32 %v737, 4294901760
    %1313 = vmatpush1.msra.mxu0 %v1312
    %1314 = vmatprep.subr.mxu0 0.0
    %v1315 = vand.u32 %v738, 4294901760
    %1316 = vmatpush1.msra.mxu0 %v1315
    %1317 = vmatprep.subr.mxu0 0.0
    %v1318 = vand.u32 %v739, 4294901760
    %1319 = vmatpush1.msra.mxu0 %v1318
    %1320 = vmatprep.subr.mxu0 0.0
    %v1321 = vand.u32 %v740, 4294901760
    %1322 = vmatpush1.msra.mxu0 %v1321
    %1323 = vmatprep.subr.mxu0 0.0
    %v1324 = vand.u32 %v741, 4294901760
    %1325 = vmatpush1.msra.mxu0 %v1324
    %1326 = vmatprep.subr.mxu0 0.0
    %v1327 = vand.u32 %v742, 4294901760
    %1328 = vmatpush1.msra.mxu0 %v1327
    %1329 = vmatprep.subr.mxu0 0.0
    %v1330 = vand.u32 %v743, 4294901760
    %1331 = vmatpush1.msra.mxu0 %v1330
    %1332 = vmatprep.subr.mxu0 0.0
    %v1333 = vand.u32 %v744, 4294901760
    %1334 = vmatpush1.msra.mxu0 %v1333
    %1335 = vmatprep.subr.mxu0 0.0
    %v1336 = vand.u32 %v745, 4294901760
    %1337 = vmatpush1.msra.mxu0 %v1336
    %1338 = vmatprep.subr.mxu0 0.0
    %v1339 = vand.u32 %v746, 4294901760
    %1340 = vmatpush1.msra.mxu0 %v1339
    %1341 = vmatprep.subr.mxu0 0.0
    %v1342 = vand.u32 %v747, 4294901760
    %1343 = vmatpush1.msra.mxu0 %v1342
    %1344 = vmatprep.subr.mxu0 0.0
    %v1345 = vand.u32 %v748, 4294901760
    %1346 = vmatpush1.msra.mxu0 %v1345
    %1347 = vmatprep.subr.mxu0 0.0
    %v1348 = vand.u32 %v749, 4294901760
    %1349 = vmatpush1.msra.mxu0 %v1348
    %1350 = vmatprep.subr.mxu0 0.0
    %v1351 = vand.u32 %v750, 4294901760
    %1352 = vmatpush1.msra.mxu0 %v1351
    %1353 = vmatprep.subr.mxu0 0.0
    %1354 = vmatpush1.msra.mxu0 0.0
    %1355 = vmatprep.subr.mxu0 0.0
    %1356 = vmatpush1.msra.mxu0 0.0
    %1357 = vmatprep.subr.mxu0 0.0
    %1358 = vmatpush1.msra.mxu0 0.0
    %1359 = vmatprep.subr.mxu0 0.0
    %1360 = vmatpush1.msra.mxu0 0.0
    %1361 = vmatprep.subr.mxu0 0.0
    %1362 = vmatpush1.msra.mxu0 0.0
    %1363 = vmatprep.subr.mxu0 0.0
    %1364 = vmatpush1.msra.mxu0 0.0
    %1365 = vmatprep.subr.mxu0 0.0
    %1366 = vmatpush1.msra.mxu0 0.0
    %1367 = vmatprep.subr.mxu0 0.0
    %1368 = vmatpush1.msra.mxu0 0.0
    %1369 = vmatprep.subr.mxu0 0.0
    %1370 = vmatpush1.msra.mxu0 0.0
    %1371 = vmatprep.subr.mxu0 0.0
    %1372 = vmatpush1.msra.mxu0 0.0
    %1373 = vmatprep.subr.mxu0 0.0
    %1374 = vmatpush1.msra.mxu0 0.0
    %1375 = vmatprep.subr.mxu0 0.0
    %1376 = vmatpush1.msra.mxu0 0.0
    %1377 = vmatprep.subr.mxu0 0.0
    %1378 = vmatpush1.msra.mxu0 0.0
    %1379 = vmatprep.subr.mxu0 0.0
    %1380 = vmatpush1.msra.mxu0 0.0
    %1381 = vmatprep.subr.mxu0 0.0
    %1382 = vmatpush1.msra.mxu0 0.0
    %1383 = vmatprep.subr.mxu0 0.0
    %1384 = vmatpush1.msra.mxu0 0.0
    %1385 = vmatprep.mubr.f32.mxu0 0.0
    %v1386 = vand.u32 %v75, 4294901760
    %1387 = vmatmul.mubr.f32.gmra.mrb[0].mxu0 %v1386
    %v1388 = vpop.f32.mrb[0].mxu0
    %v1389 = vadd.f32 %v1302, %v1388
    %v1390 = vpop.f32.mrb[0].mxu0
    %1391 = vdwg.mxu0
    %1392 = vst [vmem:[#allocation11] sm:$0xff] %v1389
    %v1393 = vld [vmem:[#allocation8] sm:$0xff]
    %v1394 = vld [vmem:[#allocation8 + $0x8] sm:$0xff]
    %v1395 = vld [vmem:[#allocation8 + $0x10] sm:$0xff]
    %v1396 = vld [vmem:[#allocation8 + $0x18] sm:$0xff]
    %v1397 = vld [vmem:[#allocation8 + $0x20] sm:$0xff]
    %v1398 = vld [vmem:[#allocation8 + $0x28] sm:$0xff]
    %v1399 = vld [vmem:[#allocation8 + $0x30] sm:$0xff]
    %v1400 = vld [vmem:[#allocation8 + $0x38] sm:$0xff]
    %v1401 = vld [vmem:[#allocation8 + $0x40] sm:$0xff]
    %v1402 = vld [vmem:[#allocation8 + $0x48] sm:$0xff]
    %v1403 = vld [vmem:[#allocation8 + $0x50] sm:$0xff]
    %v1404 = vld [vmem:[#allocation8 + $0x58] sm:$0xff]
    %v1405 = vld [vmem:[#allocation8 + $0x60] sm:$0xff]
    %v1406 = vld [vmem:[#allocation8 + $0x68] sm:$0xff]
    %v1407 = vld [vmem:[#allocation8 + $0x70] sm:$0xff]
    %v1408 = vld [vmem:[#allocation8 + $0x78] sm:$0xff]
    %1409 = vmatprep.subr.mxu0 0.0
    %v1410 = vand.u32 %v1393, 4294901760
    %1411 = vmatpush1.msra.mxu0 %v1410
    %1412 = vmatprep.subr.mxu0 0.0
    %v1413 = vand.u32 %v1394, 4294901760
    %1414 = vmatpush1.msra.mxu0 %v1413
    %1415 = vmatprep.subr.mxu0 0.0
    %v1416 = vand.u32 %v1395, 4294901760
    %1417 = vmatpush1.msra.mxu0 %v1416
    %1418 = vmatprep.subr.mxu0 0.0
    %v1419 = vand.u32 %v1396, 4294901760
    %1420 = vmatpush1.msra.mxu0 %v1419
    %1421 = vmatprep.subr.mxu0 0.0
    %v1422 = vand.u32 %v1397, 4294901760
    %1423 = vmatpush1.msra.mxu0 %v1422
    %1424 = vmatprep.subr.mxu0 0.0
    %v1425 = vand.u32 %v1398, 4294901760
    %1426 = vmatpush1.msra.mxu0 %v1425
    %1427 = vmatprep.subr.mxu0 0.0
    %v1428 = vand.u32 %v1399, 4294901760
    %1429 = vmatpush1.msra.mxu0 %v1428
    %1430 = vmatprep.subr.mxu0 0.0
    %v1431 = vand.u32 %v1400, 4294901760
    %1432 = vmatpush1.msra.mxu0 %v1431
    %1433 = vmatprep.subr.mxu0 0.0
    %v1434 = vand.u32 %v1401, 4294901760
    %1435 = vmatpush1.msra.mxu0 %v1434
    %1436 = vmatprep.subr.mxu0 0.0
    %v1437 = vand.u32 %v1402, 4294901760
    %1438 = vmatpush1.msra.mxu0 %v1437
    %1439 = vmatprep.subr.mxu0 0.0
    %v1440 = vand.u32 %v1403, 4294901760
    %1441 = vmatpush1.msra.mxu0 %v1440
    %1442 = vmatprep.subr.mxu0 0.0
    %v1443 = vand.u32 %v1404, 4294901760
    %1444 = vmatpush1.msra.mxu0 %v1443
    %1445 = vmatprep.subr.mxu0 0.0
    %v1446 = vand.u32 %v1405, 4294901760
    %1447 = vmatpush1.msra.mxu0 %v1446
    %1448 = vmatprep.subr.mxu0 0.0
    %v1449 = vand.u32 %v1406, 4294901760
    %1450 = vmatpush1.msra.mxu0 %v1449
    %1451 = vmatprep.subr.mxu0 0.0
    %v1452 = vand.u32 %v1407, 4294901760
    %1453 = vmatpush1.msra.mxu0 %v1452
    %1454 = vmatprep.subr.mxu0 0.0
    %v1455 = vand.u32 %v1408, 4294901760
    %1456 = vmatpush1.msra.mxu0 %v1455
    %1457 = vmatprep.subr.mxu0 0.0
    %1458 = vmatpush1.msra.mxu0 0.0
    %1459 = vmatprep.subr.mxu0 0.0
    %1460 = vmatpush1.msra.mxu0 0.0
    %1461 = vmatprep.subr.mxu0 0.0
    %1462 = vmatpush1.msra.mxu0 0.0
    %1463 = vmatprep.subr.mxu0 0.0
    %1464 = vmatpush1.msra.mxu0 0.0
    %1465 = vmatprep.subr.mxu0 0.0
    %1466 = vmatpush1.msra.mxu0 0.0
    %1467 = vmatprep.subr.mxu0 0.0
    %1468 = vmatpush1.msra.mxu0 0.0
    %1469 = vmatprep.subr.mxu0 0.0
    %1470 = vmatpush1.msra.mxu0 0.0
    %1471 = vmatprep.subr.mxu0 0.0
    %1472 = vmatpush1.msra.mxu0 0.0
    %1473 = vmatprep.subr.mxu0 0.0
    %1474 = vmatpush1.msra.mxu0 0.0
    %1475 = vmatprep.subr.mxu0 0.0
    %1476 = vmatpush1.msra.mxu0 0.0
    %1477 = vmatprep.subr.mxu0 0.0
    %1478 = vmatpush1.msra.mxu0 0.0
    %1479 = vmatprep.subr.mxu0 0.0
    %1480 = vmatpush1.msra.mxu0 0.0
    %1481 = vmatprep.subr.mxu0 0.0
    %1482 = vmatpush1.msra.mxu0 0.0
    %1483 = vmatprep.subr.mxu0 0.0
    %1484 = vmatpush1.msra.mxu0 0.0
    %1485 = vmatprep.subr.mxu0 0.0
    %1486 = vmatpush1.msra.mxu0 0.0
    %1487 = vmatprep.subr.mxu0 0.0
    %1488 = vmatpush1.msra.mxu0 0.0
    %1489 = vmatprep.mubr.f32.mxu0 0.0
    %v1490 = vand.u32 %v75, 4294901760
    %v1491 = vsub.f32 %v75, %v1490
    %v1492 = vand.u32 %v1491, 4294901760
    %v1493 = vsub.f32 %v1491, %v1492
    %v1494 = vand.u32 %v1493, 4294901760
    %1495 = vmatmul.mubr.f32.gmra.mrb[0].mxu0 %v1494
    %v1496 = vpop.f32.mrb[0].mxu0
    %v1497 = vadd.f32 0.0, %v1496
    %v1498 = vpop.f32.mrb[0].mxu0
    %1499 = vdwg.mxu0
    %1500 = vmatprep.subr.mxu0 0.0
    %v1501 = vand.u32 %v1393, 4294901760
    %v1502 = vsub.f32 %v1393, %v1501
    %v1503 = vand.u32 %v1502, 4294901760
    %v1504 = vsub.f32 %v1502, %v1503
    %v1505 = vand.u32 %v1504, 4294901760
    %1506 = vmatpush1.msra.mxu0 %v1505
    %1507 = vmatprep.subr.mxu0 0.0
    %v1508 = vand.u32 %v1394, 4294901760
    %v1509 = vsub.f32 %v1394, %v1508
    %v1510 = vand.u32 %v1509, 4294901760
    %v1511 = vsub.f32 %v1509, %v1510
    %v1512 = vand.u32 %v1511, 4294901760
    %1513 = vmatpush1.msra.mxu0 %v1512
    %1514 = vmatprep.subr.mxu0 0.0
    %v1515 = vand.u32 %v1395, 4294901760
    %v1516 = vsub.f32 %v1395, %v1515
    %v1517 = vand.u32 %v1516, 4294901760
    %v1518 = vsub.f32 %v1516, %v1517
    %v1519 = vand.u32 %v1518, 4294901760
    %1520 = vmatpush1.msra.mxu0 %v1519
    %1521 = vmatprep.subr.mxu0 0.0
    %v1522 = vand.u32 %v1396, 4294901760
    %v1523 = vsub.f32 %v1396, %v1522
    %v1524 = vand.u32 %v1523, 4294901760
    %v1525 = vsub.f32 %v1523, %v1524
    %v1526 = vand.u32 %v1525, 4294901760
    %1527 = vmatpush1.msra.mxu0 %v1526
    %1528 = vmatprep.subr.mxu0 0.0
    %v1529 = vand.u32 %v1397, 4294901760
    %v1530 = vsub.f32 %v1397, %v1529
    %v1531 = vand.u32 %v1530, 4294901760
    %v1532 = vsub.f32 %v1530, %v1531
    %v1533 = vand.u32 %v1532, 4294901760
    %1534 = vmatpush1.msra.mxu0 %v1533
    %1535 = vmatprep.subr.mxu0 0.0
    %v1536 = vand.u32 %v1398, 4294901760
    %v1537 = vsub.f32 %v1398, %v1536
    %v1538 = vand.u32 %v1537, 4294901760
    %v1539 = vsub.f32 %v1537, %v1538
    %v1540 = vand.u32 %v1539, 4294901760
    %1541 = vmatpush1.msra.mxu0 %v1540
    %1542 = vmatprep.subr.mxu0 0.0
    %v1543 = vand.u32 %v1399, 4294901760
    %v1544 = vsub.f32 %v1399, %v1543
    %v1545 = vand.u32 %v1544, 4294901760
    %v1546 = vsub.f32 %v1544, %v1545
    %v1547 = vand.u32 %v1546, 4294901760
    %1548 = vmatpush1.msra.mxu0 %v1547
    %1549 = vmatprep.subr.mxu0 0.0
    %v1550 = vand.u32 %v1400, 4294901760
    %v1551 = vsub.f32 %v1400, %v1550
    %v1552 = vand.u32 %v1551, 4294901760
    %v1553 = vsub.f32 %v1551, %v1552
    %v1554 = vand.u32 %v1553, 4294901760
    %1555 = vmatpush1.msra.mxu0 %v1554
    %1556 = vmatprep.subr.mxu0 0.0
    %v1557 = vand.u32 %v1401, 4294901760
    %v1558 = vsub.f32 %v1401, %v1557
    %v1559 = vand.u32 %v1558, 4294901760
    %v1560 = vsub.f32 %v1558, %v1559
    %v1561 = vand.u32 %v1560, 4294901760
    %1562 = vmatpush1.msra.mxu0 %v1561
    %1563 = vmatprep.subr.mxu0 0.0
    %v1564 = vand.u32 %v1402, 4294901760
    %v1565 = vsub.f32 %v1402, %v1564
    %v1566 = vand.u32 %v1565, 4294901760
    %v1567 = vsub.f32 %v1565, %v1566
    %v1568 = vand.u32 %v1567, 4294901760
    %1569 = vmatpush1.msra.mxu0 %v1568
    %1570 = vmatprep.subr.mxu0 0.0
    %v1571 = vand.u32 %v1403, 4294901760
    %v1572 = vsub.f32 %v1403, %v1571
    %v1573 = vand.u32 %v1572, 4294901760
    %v1574 = vsub.f32 %v1572, %v1573
    %v1575 = vand.u32 %v1574, 4294901760
    %1576 = vmatpush1.msra.mxu0 %v1575
    %1577 = vmatprep.subr.mxu0 0.0
    %v1578 = vand.u32 %v1404, 4294901760
    %v1579 = vsub.f32 %v1404, %v1578
    %v1580 = vand.u32 %v1579, 4294901760
    %v1581 = vsub.f32 %v1579, %v1580
    %v1582 = vand.u32 %v1581, 4294901760
    %1583 = vmatpush1.msra.mxu0 %v1582
    %1584 = vmatprep.subr.mxu0 0.0
    %v1585 = vand.u32 %v1405, 4294901760
    %v1586 = vsub.f32 %v1405, %v1585
    %v1587 = vand.u32 %v1586, 4294901760
    %v1588 = vsub.f32 %v1586, %v1587
    %v1589 = vand.u32 %v1588, 4294901760
    %1590 = vmatpush1.msra.mxu0 %v1589
    %1591 = vmatprep.subr.mxu0 0.0
    %v1592 = vand.u32 %v1406, 4294901760
    %v1593 = vsub.f32 %v1406, %v1592
    %v1594 = vand.u32 %v1593, 4294901760
    %v1595 = vsub.f32 %v1593, %v1594
    %v1596 = vand.u32 %v1595, 4294901760
    %1597 = vmatpush1.msra.mxu0 %v1596
    %1598 = vmatprep.subr.mxu0 0.0
    %v1599 = vand.u32 %v1407, 4294901760
    %v1600 = vsub.f32 %v1407, %v1599
    %v1601 = vand.u32 %v1600, 4294901760
    %v1602 = vsub.f32 %v1600, %v1601
    %v1603 = vand.u32 %v1602, 4294901760
    %1604 = vmatpush1.msra.mxu0 %v1603
    %1605 = vmatprep.subr.mxu0 0.0
    %v1606 = vand.u32 %v1408, 4294901760
    %v1607 = vsub.f32 %v1408, %v1606
    %v1608 = vand.u32 %v1607, 4294901760
    %v1609 = vsub.f32 %v1607, %v1608
    %v1610 = vand.u32 %v1609, 4294901760
    %1611 = vmatpush1.msra.mxu0 %v1610
    %1612 = vmatprep.subr.mxu0 0.0
    %1613 = vmatpush1.msra.mxu0 0.0
    %1614 = vmatprep.subr.mxu0 0.0
    %1615 = vmatpush1.msra.mxu0 0.0
    %1616 = vmatprep.subr.mxu0 0.0
    %1617 = vmatpush1.msra.mxu0 0.0
    %1618 = vmatprep.subr.mxu0 0.0
    %1619 = vmatpush1.msra.mxu0 0.0
    %1620 = vmatprep.subr.mxu0 0.0
    %1621 = vmatpush1.msra.mxu0 0.0
    %1622 = vmatprep.subr.mxu0 0.0
    %1623 = vmatpush1.msra.mxu0 0.0
    %1624 = vmatprep.subr.mxu0 0.0
    %1625 = vmatpush1.msra.mxu0 0.0
    %1626 = vmatprep.subr.mxu0 0.0
    %1627 = vmatpush1.msra.mxu0 0.0
    %1628 = vmatprep.subr.mxu0 0.0
    %1629 = vmatpush1.msra.mxu0 0.0
    %1630 = vmatprep.subr.mxu0 0.0
    %1631 = vmatpush1.msra.mxu0 0.0
    %1632 = vmatprep.subr.mxu0 0.0
    %1633 = vmatpush1.msra.mxu0 0.0
    %1634 = vmatprep.subr.mxu0 0.0
    %1635 = vmatpush1.msra.mxu0 0.0
    %1636 = vmatprep.subr.mxu0 0.0
    %1637 = vmatpush1.msra.mxu0 0.0
    %1638 = vmatprep.subr.mxu0 0.0
    %1639 = vmatpush1.msra.mxu0 0.0
    %1640 = vmatprep.subr.mxu0 0.0
    %1641 = vmatpush1.msra.mxu0 0.0
    %1642 = vmatprep.subr.mxu0 0.0
    %1643 = vmatpush1.msra.mxu0 0.0
    %1644 = vmatprep.mubr.f32.mxu0 0.0
    %v1645 = vand.u32 %v75, 4294901760
    %1646 = vmatmul.mubr.f32.gmra.mrb[0].mxu0 %v1645
    %v1647 = vpop.f32.mrb[0].mxu0
    %v1648 = vadd.f32 %v1497, %v1647
    %v1649 = vpop.f32.mrb[0].mxu0
    %1650 = vdwg.mxu0
    %1651 = vmatprep.subr.mxu0 0.0
    %v1652 = vand.u32 %v1393, 4294901760
    %v1653 = vsub.f32 %v1393, %v1652
    %1654 = vmatpush1.msra.mxu0 %v1653
    %1655 = vmatprep.subr.mxu0 0.0
    %v1656 = vand.u32 %v1394, 4294901760
    %v1657 = vsub.f32 %v1394, %v1656
    %1658 = vmatpush1.msra.mxu0 %v1657
    %1659 = vmatprep.subr.mxu0 0.0
    %v1660 = vand.u32 %v1395, 4294901760
    %v1661 = vsub.f32 %v1395, %v1660
    %1662 = vmatpush1.msra.mxu0 %v1661
    %1663 = vmatprep.subr.mxu0 0.0
    %v1664 = vand.u32 %v1396, 4294901760
    %v1665 = vsub.f32 %v1396, %v1664
    %1666 = vmatpush1.msra.mxu0 %v1665
    %1667 = vmatprep.subr.mxu0 0.0
    %v1668 = vand.u32 %v1397, 4294901760
    %v1669 = vsub.f32 %v1397, %v1668
    %1670 = vmatpush1.msra.mxu0 %v1669
    %1671 = vmatprep.subr.mxu0 0.0
    %v1672 = vand.u32 %v1398, 4294901760
    %v1673 = vsub.f32 %v1398, %v1672
    %1674 = vmatpush1.msra.mxu0 %v1673
    %1675 = vmatprep.subr.mxu0 0.0
    %v1676 = vand.u32 %v1399, 4294901760
    %v1677 = vsub.f32 %v1399, %v1676
    %1678 = vmatpush1.msra.mxu0 %v1677
    %1679 = vmatprep.subr.mxu0 0.0
    %v1680 = vand.u32 %v1400, 4294901760
    %v1681 = vsub.f32 %v1400, %v1680
    %1682 = vmatpush1.msra.mxu0 %v1681
    %1683 = vmatprep.subr.mxu0 0.0
    %v1684 = vand.u32 %v1401, 4294901760
    %v1685 = vsub.f32 %v1401, %v1684
    %1686 = vmatpush1.msra.mxu0 %v1685
    %1687 = vmatprep.subr.mxu0 0.0
    %v1688 = vand.u32 %v1402, 4294901760
    %v1689 = vsub.f32 %v1402, %v1688
    %1690 = vmatpush1.msra.mxu0 %v1689
    %1691 = vmatprep.subr.mxu0 0.0
    %v1692 = vand.u32 %v1403, 4294901760
    %v1693 = vsub.f32 %v1403, %v1692
    %1694 = vmatpush1.msra.mxu0 %v1693
    %1695 = vmatprep.subr.mxu0 0.0
    %v1696 = vand.u32 %v1404, 4294901760
    %v1697 = vsub.f32 %v1404, %v1696
    %1698 = vmatpush1.msra.mxu0 %v1697
    %1699 = vmatprep.subr.mxu0 0.0
    %v1700 = vand.u32 %v1405, 4294901760
    %v1701 = vsub.f32 %v1405, %v1700
    %1702 = vmatpush1.msra.mxu0 %v1701
    %1703 = vmatprep.subr.mxu0 0.0
    %v1704 = vand.u32 %v1406, 4294901760
    %v1705 = vsub.f32 %v1406, %v1704
    %1706 = vmatpush1.msra.mxu0 %v1705
    %1707 = vmatprep.subr.mxu0 0.0
    %v1708 = vand.u32 %v1407, 4294901760
    %v1709 = vsub.f32 %v1407, %v1708
    %1710 = vmatpush1.msra.mxu0 %v1709
    %1711 = vmatprep.subr.mxu0 0.0
    %v1712 = vand.u32 %v1408, 4294901760
    %v1713 = vsub.f32 %v1408, %v1712
    %1714 = vmatpush1.msra.mxu0 %v1713
    %1715 = vmatprep.subr.mxu0 0.0
    %1716 = vmatpush1.msra.mxu0 0.0
    %1717 = vmatprep.subr.mxu0 0.0
    %1718 = vmatpush1.msra.mxu0 0.0
    %1719 = vmatprep.subr.mxu0 0.0
    %1720 = vmatpush1.msra.mxu0 0.0
    %1721 = vmatprep.subr.mxu0 0.0
    %1722 = vmatpush1.msra.mxu0 0.0
    %1723 = vmatprep.subr.mxu0 0.0
    %1724 = vmatpush1.msra.mxu0 0.0
    %1725 = vmatprep.subr.mxu0 0.0
    %1726 = vmatpush1.msra.mxu0 0.0
    %1727 = vmatprep.subr.mxu0 0.0
    %1728 = vmatpush1.msra.mxu0 0.0
    %1729 = vmatprep.subr.mxu0 0.0
    %1730 = vmatpush1.msra.mxu0 0.0
    %1731 = vmatprep.subr.mxu0 0.0
    %1732 = vmatpush1.msra.mxu0 0.0
    %1733 = vmatprep.subr.mxu0 0.0
    %1734 = vmatpush1.msra.mxu0 0.0
    %1735 = vmatprep.subr.mxu0 0.0
    %1736 = vmatpush1.msra.mxu0 0.0
    %1737 = vmatprep.subr.mxu0 0.0
    %1738 = vmatpush1.msra.mxu0 0.0
    %1739 = vmatprep.subr.mxu0 0.0
    %1740 = vmatpush1.msra.mxu0 0.0
    %1741 = vmatprep.subr.mxu0 0.0
    %1742 = vmatpush1.msra.mxu0 0.0
    %1743 = vmatprep.subr.mxu0 0.0
    %1744 = vmatpush1.msra.mxu0 0.0
    %1745 = vmatprep.subr.mxu0 0.0
    %1746 = vmatpush1.msra.mxu0 0.0
    %1747 = vmatprep.mubr.f32.mxu0 0.0
    %v1748 = vand.u32 %v75, 4294901760
    %v1749 = vsub.f32 %v75, %v1748
    %1750 = vmatmul.mubr.f32.gmra.mrb[0].mxu0 %v1749
    %v1751 = vpop.f32.mrb[0].mxu0
    %v1752 = vadd.f32 %v1648, %v1751
    %v1753 = vpop.f32.mrb[0].mxu0
    %1754 = vdwg.mxu0
    %1755 = vmatprep.subr.mxu0 0.0
    %v1756 = vand.u32 %v1393, 4294901760
    %1757 = vmatpush1.msra.mxu0 %v1756
    %1758 = vmatprep.subr.mxu0 0.0
    %v1759 = vand.u32 %v1394, 4294901760
    %1760 = vmatpush1.msra.mxu0 %v1759
    %1761 = vmatprep.subr.mxu0 0.0
    %v1762 = vand.u32 %v1395, 4294901760
    %1763 = vmatpush1.msra.mxu0 %v1762
    %1764 = vmatprep.subr.mxu0 0.0
    %v1765 = vand.u32 %v1396, 4294901760
    %1766 = vmatpush1.msra.mxu0 %v1765
    %1767 = vmatprep.subr.mxu0 0.0
    %v1768 = vand.u32 %v1397, 4294901760
    %1769 = vmatpush1.msra.mxu0 %v1768
    %1770 = vmatprep.subr.mxu0 0.0
    %v1771 = vand.u32 %v1398, 4294901760
    %1772 = vmatpush1.msra.mxu0 %v1771
    %1773 = vmatprep.subr.mxu0 0.0
    %v1774 = vand.u32 %v1399, 4294901760
    %1775 = vmatpush1.msra.mxu0 %v1774
    %1776 = vmatprep.subr.mxu0 0.0
    %v1777 = vand.u32 %v1400, 4294901760
    %1778 = vmatpush1.msra.mxu0 %v1777
    %1779 = vmatprep.subr.mxu0 0.0
    %v1780 = vand.u32 %v1401, 4294901760
    %1781 = vmatpush1.msra.mxu0 %v1780
    %1782 = vmatprep.subr.mxu0 0.0
    %v1783 = vand.u32 %v1402, 4294901760
    %1784 = vmatpush1.msra.mxu0 %v1783
    %1785 = vmatprep.subr.mxu0 0.0
    %v1786 = vand.u32 %v1403, 4294901760
    %1787 = vmatpush1.msra.mxu0 %v1786
    %1788 = vmatprep.subr.mxu0 0.0
    %v1789 = vand.u32 %v1404, 4294901760
    %1790 = vmatpush1.msra.mxu0 %v1789
    %1791 = vmatprep.subr.mxu0 0.0
    %v1792 = vand.u32 %v1405, 4294901760
    %1793 = vmatpush1.msra.mxu0 %v1792
    %1794 = vmatprep.subr.mxu0 0.0
    %v1795 = vand.u32 %v1406, 4294901760
    %1796 = vmatpush1.msra.mxu0 %v1795
    %1797 = vmatprep.subr.mxu0 0.0
    %v1798 = vand.u32 %v1407, 4294901760
    %1799 = vmatpush1.msra.mxu0 %v1798
    %1800 = vmatprep.subr.mxu0 0.0
    %v1801 = vand.u32 %v1408, 4294901760
    %1802 = vmatpush1.msra.mxu0 %v1801
    %1803 = vmatprep.subr.mxu0 0.0
    %1804 = vmatpush1.msra.mxu0 0.0
    %1805 = vmatprep.subr.mxu0 0.0
    %1806 = vmatpush1.msra.mxu0 0.0
    %1807 = vmatprep.subr.mxu0 0.0
    %1808 = vmatpush1.msra.mxu0 0.0
    %1809 = vmatprep.subr.mxu0 0.0
    %1810 = vmatpush1.msra.mxu0 0.0
    %1811 = vmatprep.subr.mxu0 0.0
    %1812 = vmatpush1.msra.mxu0 0.0
    %1813 = vmatprep.subr.mxu0 0.0
    %1814 = vmatpush1.msra.mxu0 0.0
    %1815 = vmatprep.subr.mxu0 0.0
    %1816 = vmatpush1.msra.mxu0 0.0
    %1817 = vmatprep.subr.mxu0 0.0
    %1818 = vmatpush1.msra.mxu0 0.0
    %1819 = vmatprep.subr.mxu0 0.0
    %1820 = vmatpush1.msra.mxu0 0.0
    %1821 = vmatprep.subr.mxu0 0.0
    %1822 = vmatpush1.msra.mxu0 0.0
    %1823 = vmatprep.subr.mxu0 0.0
    %1824 = vmatpush1.msra.mxu0 0.0
    %1825 = vmatprep.subr.mxu0 0.0
    %1826 = vmatpush1.msra.mxu0 0.0
    %1827 = vmatprep.subr.mxu0 0.0
    %1828 = vmatpush1.msra.mxu0 0.0
    %1829 = vmatprep.subr.mxu0 0.0
    %1830 = vmatpush1.msra.mxu0 0.0
    %1831 = vmatprep.subr.mxu0 0.0
    %1832 = vmatpush1.msra.mxu0 0.0
    %1833 = vmatprep.subr.mxu0 0.0
    %1834 = vmatpush1.msra.mxu0 0.0
    %1835 = vmatprep.mubr.f32.mxu0 0.0
    %v1836 = vand.u32 %v75, 4294901760
    %v1837 = vsub.f32 %v75, %v1836
    %v1838 = vand.u32 %v1837, 4294901760
    %1839 = vmatmul.mubr.f32.gmra.mrb[0].mxu0 %v1838
    %v1840 = vpop.f32.mrb[0].mxu0
    %v1841 = vadd.f32 %v1752, %v1840
    %v1842 = vpop.f32.mrb[0].mxu0
    %1843 = vdwg.mxu0
    %1844 = vmatprep.subr.mxu0 0.0
    %v1845 = vand.u32 %v1393, 4294901760
    %v1846 = vsub.f32 %v1393, %v1845
    %v1847 = vand.u32 %v1846, 4294901760
    %1848 = vmatpush1.msra.mxu0 %v1847
    %1849 = vmatprep.subr.mxu0 0.0
    %v1850 = vand.u32 %v1394, 4294901760
    %v1851 = vsub.f32 %v1394, %v1850
    %v1852 = vand.u32 %v1851, 4294901760
    %1853 = vmatpush1.msra.mxu0 %v1852
    %1854 = vmatprep.subr.mxu0 0.0
    %v1855 = vand.u32 %v1395, 4294901760
    %v1856 = vsub.f32 %v1395, %v1855
    %v1857 = vand.u32 %v1856, 4294901760
    %1858 = vmatpush1.msra.mxu0 %v1857
    %1859 = vmatprep.subr.mxu0 0.0
    %v1860 = vand.u32 %v1396, 4294901760
    %v1861 = vsub.f32 %v1396, %v1860
    %v1862 = vand.u32 %v1861, 4294901760
    %1863 = vmatpush1.msra.mxu0 %v1862
    %1864 = vmatprep.subr.mxu0 0.0
    %v1865 = vand.u32 %v1397, 4294901760
    %v1866 = vsub.f32 %v1397, %v1865
    %v1867 = vand.u32 %v1866, 4294901760
    %1868 = vmatpush1.msra.mxu0 %v1867
    %1869 = vmatprep.subr.mxu0 0.0
    %v1870 = vand.u32 %v1398, 4294901760
    %v1871 = vsub.f32 %v1398, %v1870
    %v1872 = vand.u32 %v1871, 4294901760
    %1873 = vmatpush1.msra.mxu0 %v1872
    %1874 = vmatprep.subr.mxu0 0.0
    %v1875 = vand.u32 %v1399, 4294901760
    %v1876 = vsub.f32 %v1399, %v1875
    %v1877 = vand.u32 %v1876, 4294901760
    %1878 = vmatpush1.msra.mxu0 %v1877
    %1879 = vmatprep.subr.mxu0 0.0
    %v1880 = vand.u32 %v1400, 4294901760
    %v1881 = vsub.f32 %v1400, %v1880
    %v1882 = vand.u32 %v1881, 4294901760
    %1883 = vmatpush1.msra.mxu0 %v1882
    %1884 = vmatprep.subr.mxu0 0.0
    %v1885 = vand.u32 %v1401, 4294901760
    %v1886 = vsub.f32 %v1401, %v1885
    %v1887 = vand.u32 %v1886, 4294901760
    %1888 = vmatpush1.msra.mxu0 %v1887
    %1889 = vmatprep.subr.mxu0 0.0
    %v1890 = vand.u32 %v1402, 4294901760
    %v1891 = vsub.f32 %v1402, %v1890
    %v1892 = vand.u32 %v1891, 4294901760
    %1893 = vmatpush1.msra.mxu0 %v1892
    %1894 = vmatprep.subr.mxu0 0.0
    %v1895 = vand.u32 %v1403, 4294901760
    %v1896 = vsub.f32 %v1403, %v1895
    %v1897 = vand.u32 %v1896, 4294901760
    %1898 = vmatpush1.msra.mxu0 %v1897
    %1899 = vmatprep.subr.mxu0 0.0
    %v1900 = vand.u32 %v1404, 4294901760
    %v1901 = vsub.f32 %v1404, %v1900
    %v1902 = vand.u32 %v1901, 4294901760
    %1903 = vmatpush1.msra.mxu0 %v1902
    %1904 = vmatprep.subr.mxu0 0.0
    %v1905 = vand.u32 %v1405, 4294901760
    %v1906 = vsub.f32 %v1405, %v1905
    %v1907 = vand.u32 %v1906, 4294901760
    %1908 = vmatpush1.msra.mxu0 %v1907
    %1909 = vmatprep.subr.mxu0 0.0
    %v1910 = vand.u32 %v1406, 4294901760
    %v1911 = vsub.f32 %v1406, %v1910
    %v1912 = vand.u32 %v1911, 4294901760
    %1913 = vmatpush1.msra.mxu0 %v1912
    %1914 = vmatprep.subr.mxu0 0.0
    %v1915 = vand.u32 %v1407, 4294901760
    %v1916 = vsub.f32 %v1407, %v1915
    %v1917 = vand.u32 %v1916, 4294901760
    %1918 = vmatpush1.msra.mxu0 %v1917
    %1919 = vmatprep.subr.mxu0 0.0
    %v1920 = vand.u32 %v1408, 4294901760
    %v1921 = vsub.f32 %v1408, %v1920
    %v1922 = vand.u32 %v1921, 4294901760
    %1923 = vmatpush1.msra.mxu0 %v1922
    %1924 = vmatprep.subr.mxu0 0.0
    %1925 = vmatpush1.msra.mxu0 0.0
    %1926 = vmatprep.subr.mxu0 0.0
    %1927 = vmatpush1.msra.mxu0 0.0
    %1928 = vmatprep.subr.mxu0 0.0
    %1929 = vmatpush1.msra.mxu0 0.0
    %1930 = vmatprep.subr.mxu0 0.0
    %1931 = vmatpush1.msra.mxu0 0.0
    %1932 = vmatprep.subr.mxu0 0.0
    %1933 = vmatpush1.msra.mxu0 0.0
    %1934 = vmatprep.subr.mxu0 0.0
    %1935 = vmatpush1.msra.mxu0 0.0
    %1936 = vmatprep.subr.mxu0 0.0
    %1937 = vmatpush1.msra.mxu0 0.0
    %1938 = vmatprep.subr.mxu0 0.0
    %1939 = vmatpush1.msra.mxu0 0.0
    %1940 = vmatprep.subr.mxu0 0.0
    %1941 = vmatpush1.msra.mxu0 0.0
    %1942 = vmatprep.subr.mxu0 0.0
    %1943 = vmatpush1.msra.mxu0 0.0
    %1944 = vmatprep.subr.mxu0 0.0
    %1945 = vmatpush1.msra.mxu0 0.0
    %1946 = vmatprep.subr.mxu0 0.0
    %1947 = vmatpush1.msra.mxu0 0.0
    %1948 = vmatprep.subr.mxu0 0.0
    %1949 = vmatpush1.msra.mxu0 0.0
    %1950 = vmatprep.subr.mxu0 0.0
    %1951 = vmatpush1.msra.mxu0 0.0
    %1952 = vmatprep.subr.mxu0 0.0
    %1953 = vmatpush1.msra.mxu0 0.0
    %1954 = vmatprep.subr.mxu0 0.0
    %1955 = vmatpush1.msra.mxu0 0.0
    %1956 = vmatprep.mubr.f32.mxu0 0.0
    %v1957 = vand.u32 %v75, 4294901760
    %1958 = vmatmul.mubr.f32.gmra.mrb[0].mxu0 %v1957
    %v1959 = vpop.f32.mrb[0].mxu0
    %v1960 = vadd.f32 %v1841, %v1959
    %v1961 = vpop.f32.mrb[0].mxu0
    %1962 = vdwg.mxu0
    %1963 = vmatprep.subr.mxu0 0.0
    %v1964 = vand.u32 %v1393, 4294901760
    %1965 = vmatpush1.msra.mxu0 %v1964
    %1966 = vmatprep.subr.mxu0 0.0
    %v1967 = vand.u32 %v1394, 4294901760
    %1968 = vmatpush1.msra.mxu0 %v1967
    %1969 = vmatprep.subr.mxu0 0.0
    %v1970 = vand.u32 %v1395, 4294901760
    %1971 = vmatpush1.msra.mxu0 %v1970
    %1972 = vmatprep.subr.mxu0 0.0
    %v1973 = vand.u32 %v1396, 4294901760
    %1974 = vmatpush1.msra.mxu0 %v1973
    %1975 = vmatprep.subr.mxu0 0.0
    %v1976 = vand.u32 %v1397, 4294901760
    %1977 = vmatpush1.msra.mxu0 %v1976
    %1978 = vmatprep.subr.mxu0 0.0
    %v1979 = vand.u32 %v1398, 4294901760
    %1980 = vmatpush1.msra.mxu0 %v1979
    %1981 = vmatprep.subr.mxu0 0.0
    %v1982 = vand.u32 %v1399, 4294901760
    %1983 = vmatpush1.msra.mxu0 %v1982
    %1984 = vmatprep.subr.mxu0 0.0
    %v1985 = vand.u32 %v1400, 4294901760
    %1986 = vmatpush1.msra.mxu0 %v1985
    %1987 = vmatprep.subr.mxu0 0.0
    %v1988 = vand.u32 %v1401, 4294901760
    %1989 = vmatpush1.msra.mxu0 %v1988
    %1990 = vmatprep.subr.mxu0 0.0
    %v1991 = vand.u32 %v1402, 4294901760
    %1992 = vmatpush1.msra.mxu0 %v1991
    %1993 = vmatprep.subr.mxu0 0.0
    %v1994 = vand.u32 %v1403, 4294901760
    %1995 = vmatpush1.msra.mxu0 %v1994
    %1996 = vmatprep.subr.mxu0 0.0
    %v1997 = vand.u32 %v1404, 4294901760
    %1998 = vmatpush1.msra.mxu0 %v1997
    %1999 = vmatprep.subr.mxu0 0.0
    %v2000 = vand.u32 %v1405, 4294901760
    %2001 = vmatpush1.msra.mxu0 %v2000
    %2002 = vmatprep.subr.mxu0 0.0
    %v2003 = vand.u32 %v1406, 4294901760
    %2004 = vmatpush1.msra.mxu0 %v2003
    %2005 = vmatprep.subr.mxu0 0.0
    %v2006 = vand.u32 %v1407, 4294901760
    %2007 = vmatpush1.msra.mxu0 %v2006
    %2008 = vmatprep.subr.mxu0 0.0
    %v2009 = vand.u32 %v1408, 4294901760
    %2010 = vmatpush1.msra.mxu0 %v2009
    %2011 = vmatprep.subr.mxu0 0.0
    %2012 = vmatpush1.msra.mxu0 0.0
    %2013 = vmatprep.subr.mxu0 0.0
    %2014 = vmatpush1.msra.mxu0 0.0
    %2015 = vmatprep.subr.mxu0 0.0
    %2016 = vmatpush1.msra.mxu0 0.0
    %2017 = vmatprep.subr.mxu0 0.0
    %2018 = vmatpush1.msra.mxu0 0.0
    %2019 = vmatprep.subr.mxu0 0.0
    %2020 = vmatpush1.msra.mxu0 0.0
    %2021 = vmatprep.subr.mxu0 0.0
    %2022 = vmatpush1.msra.mxu0 0.0
    %2023 = vmatprep.subr.mxu0 0.0
    %2024 = vmatpush1.msra.mxu0 0.0
    %2025 = vmatprep.subr.mxu0 0.0
    %2026 = vmatpush1.msra.mxu0 0.0
    %2027 = vmatprep.subr.mxu0 0.0
    %2028 = vmatpush1.msra.mxu0 0.0
    %2029 = vmatprep.subr.mxu0 0.0
    %2030 = vmatpush1.msra.mxu0 0.0
    %2031 = vmatprep.subr.mxu0 0.0
    %2032 = vmatpush1.msra.mxu0 0.0
    %2033 = vmatprep.subr.mxu0 0.0
    %2034 = vmatpush1.msra.mxu0 0.0
    %2035 = vmatprep.subr.mxu0 0.0
    %2036 = vmatpush1.msra.mxu0 0.0
    %2037 = vmatprep.subr.mxu0 0.0
    %2038 = vmatpush1.msra.mxu0 0.0
    %2039 = vmatprep.subr.mxu0 0.0
    %2040 = vmatpush1.msra.mxu0 0.0
    %2041 = vmatprep.subr.mxu0 0.0
    %2042 = vmatpush1.msra.mxu0 0.0
    %2043 = vmatprep.mubr.f32.mxu0 0.0
    %v2044 = vand.u32 %v75, 4294901760
    %2045 = vmatmul.mubr.f32.gmra.mrb[0].mxu0 %v2044
    %v2046 = vpop.f32.mrb[0].mxu0
    %v2047 = vadd.f32 %v1960, %v2046
    %v2048 = vpop.f32.mrb[0].mxu0
    %2049 = vdwg.mxu0
    %2050 = vst [vmem:[#allocation13] sm:$0xff] %v2047
    // Predicated region
    $region34: #{tpu_custom_call.1} parent=1 // pred_check
      _
    $region35: #{tpu_custom_call.1} parent=1 // pred_check_branch
      %2052 = sbr.rel (0) target = $region37
    $region36: #{tpu_custom_call.1} parent=1 // pred_region
      %s2054 = ssub.s32 128, 128
      %2055 = vsyncadd [#allocation4], %s2054
      %s2057 = sshll.u32 [#allocation10], 4
      %s2058 = int_to_ptr.vmem [resolvable:$true] %s2057
      %2060 = dma.vmem_to_hbm [thread:$0]  %s2058, 128, %s4, [#allocation4]
    $region37: #{tpu_custom_call.1} parent=1 // pred_fallthru
      _
    // Predicated region
    $region38: #{tpu_custom_call.1} parent=1 // pred_check
      _
    $region39: #{tpu_custom_call.1} parent=1 // pred_check_branch
      %2062 = sbr.rel (0) target = $region41
    $region40: #{tpu_custom_call.1} parent=1 // pred_region
      %s2064 = ssub.s32 128, 128
      %2065 = vsyncadd [#allocation12], %s2064
      %s2067 = sshll.u32 [#allocation11], 4
      %s2068 = int_to_ptr.vmem [resolvable:$true] %s2067
      %2070 = dma.vmem_to_hbm [thread:$0]  %s2068, 128, %s5, [#allocation12]
    $region41: #{tpu_custom_call.1} parent=1 // pred_fallthru
      _
    // Predicated region
    $region42: #{tpu_custom_call.1} parent=1 // pred_check
      _
    $region43: #{tpu_custom_call.1} parent=1 // pred_check_branch
      %2072 = sbr.rel (0) target = $region45
    $region44: #{tpu_custom_call.1} parent=1 // pred_region
      %s2074 = ssub.s32 128, 128
      %2075 = vsyncadd [#allocation12], %s2074
      %s2077 = sshll.u32 [#allocation13], 4
      %s2078 = int_to_ptr.vmem [resolvable:$true] %s2077
      %2080 = dma.vmem_to_hbm [thread:$0]  %s2078, 128, %s6, [#allocation12]
    $region45: #{tpu_custom_call.1} parent=1 // pred_fallthru
      _
    // Predicated region
    $region46: #{tpu_custom_call.1} parent=1 // pred_check
      _
    $region47: #{tpu_custom_call.1} parent=1 // pred_check_branch
      %2082 = sbr.rel (0) target = $region49
    $region48: #{tpu_custom_call.1} parent=1 // pred_region
      %2083 = dma.done [#allocation4], 128
    $region49: #{tpu_custom_call.1} parent=1 // pred_fallthru
      _
    // Predicated region
    $region50: #{tpu_custom_call.1} parent=1 // pred_check
      _
    $region51: #{tpu_custom_call.1} parent=1 // pred_check_branch
      %2085 = sbr.rel (0) target = $region53
    $region52: #{tpu_custom_call.1} parent=1 // pred_region
      %2086 = dma.done [#allocation12], 128
    $region53: #{tpu_custom_call.1} parent=1 // pred_fallthru
      _
    // Predicated region
    $region54: #{tpu_custom_call.1} parent=1 // pred_check
      _
    $region55: #{tpu_custom_call.1} parent=1 // pred_check_branch
      %2088 = sbr.rel (0) target = $region57
    $region56: #{tpu_custom_call.1} parent=1 // pred_region
      %2089 = dma.done [#allocation12], 128
    $region57: #{tpu_custom_call.1} parent=1 // pred_fallthru
      _
    %2090 = vsyncpa [#allocation3], 1
    %2091 = vsyncpa [#allocation6], 1
    %2092 = vsyncpa [#allocation9], 1
    %2093 = vsyncpa [#allocation4], 1
    %2094 = vsyncpa [#allocation12], 1

</llo_original>
